<compile_context>
chip_gen: v7x
topology: tpu7x:2x2x1
jax: 0.10.0
libtpu: 0.0.40
codegen_flags: <defaults>
</compile_context>

<pallas_src>
import jax
import jax.numpy as jnp
from jax.experimental import pallas as pl
from jax.experimental.pallas import tpu as pltpu

FEATURES_IN = 32
FEATURES_OUT = 32
NUM_FILT = 8
NUM_CF = 3                      # coord funs per family
TOTAL_CF = 4 * NUM_CF           # Triangle + Gaussian + Line + RationalHat = 12
FILT_HIDDEN = 24
CF_WIDTH = NUM_FILT * NUM_CF    # 24 lanes per coord-fun family (filtration-major, cf-minor)
GAUSS_SIGMA = 0.1               # Gaussian_transform bandwidth (constant, as in TOGL coord_transforms)
INV_TWO_SIGMA_SQ = 1.0 / (2.0 * GAUSS_SIGMA * GAUSS_SIGMA)


def _topology_kernel(x_ref, w1_ref, w2r_ref, sp_ref,
                     wx_ref, wtri_ref, wg_ref, wlin_ref, wr_ref, out_ref):
    x = x_ref[...]                                                        # [TN, 32]

    # --- packed small parameters: one [16, 32] tile ---
    sp = sp_ref[...]
    b1 = sp[0:1, :FILT_HIDDEN]       # filtration MLP hidden bias
    b2r = sp[1:2, :CF_WIDTH]         # filtration output bias, replicated 3x per filtration
    t_tri = sp[2:3, :CF_WIDTH]       # Triangle t_param (tiled over filtrations)
    mu_b = sp[3:4, :CF_WIDTH]        # Gaussian center, birth coord
    mu_d = sp[4:5, :CF_WIDTH]        # Gaussian center, death coord
    wl_s = sp[5:6, :CF_WIDTH]        # Line_transform w_birth + w_death (death == birth)
    bl = sp[6:7, :CF_WIDTH]          # Line_transform bias
    c_rh = sp[7:8, :CF_WIDTH]        # RationalHat centers
    r_abs = sp[8:9, :CF_WIDTH]       # |r_param| broadcast across lanes
    bout = sp[9:10, :FEATURES_OUT]   # output Linear bias

    # --- shared filtration MLP: Linear -> ReLU -> Linear (Identity final act) ---
    h = jnp.maximum(
        jnp.dot(x, w1_ref[...], preferred_element_type=jnp.float32) + b1, 0.0)
    # w2 columns are pre-replicated 3x per filtration -> b[:, f*3+j] = filtered_v[:, f]
    b = jnp.dot(h, w2r_ref[...], preferred_element_type=jnp.float32) + b2r  # [TN, 24]
    # fake persistence: death == birth == b

    # --- output projection accumulated per block (no lane-dim concatenate) ---
    acc = jnp.dot(x, wx_ref[...], preferred_element_type=jnp.float32)       # [TN, 32]

    # Triangle_transform: relu(d - |t - b|)
    tri = jnp.maximum(b - jnp.abs(t_tri - b), 0.0)
    acc += jnp.dot(tri, wtri_ref[...], preferred_element_type=jnp.float32)

    # Gaussian_transform: exp(-||p - mu||^2 / (2 sigma^2))
    gauss = jnp.exp(-((b - mu_b) ** 2 + (b - mu_d) ** 2) * INV_TWO_SIGMA_SQ)
    acc += jnp.dot(gauss, wg_ref[...], preferred_element_type=jnp.float32)

    # Line_transform: Linear(2 -> 3) with d == b
    line = b * wl_s + bl
    acc += jnp.dot(line, wlin_ref[...], preferred_element_type=jnp.float32)

    # RationalHat_transform: 1/(1+||p-c||_1) - 1/(1 + | |r| - ||p-c||_1 |), ||p-c||_1 = 2|b-c|
    n1 = 2.0 * jnp.abs(b - c_rh)
    rhat = (pl.reciprocal(1.0 + n1, approx=True)
            - pl.reciprocal(1.0 + jnp.abs(r_abs - n1), approx=True))
    acc += jnp.dot(rhat, wr_ref[...], preferred_element_type=jnp.float32)

    out_ref[...] = jnp.maximum(acc + bout, 0.0)                              # final ReLU


def _round_up(n, m):
    return (n + m - 1) // m * m


def _vmem_capacity_bytes():
    try:
        return int(pltpu.get_tpu_info().vmem_capacity_bytes)
    except Exception:
        return 64 << 20   # assume the smallest (v7x per-TC) if the query is unavailable


def topology_layer_forward(x, params, *, tile_n=8192):
    """Pallas wrapper. x: [N, FEATURES_IN]. Returns (out, None, None) like the module."""
    n, fin = x.shape
    assert fin == FEATURES_IN

    # ---- wrapper-side parameter packing (free layout plumbing) ----
    # Replicate filtration columns 3x so the kernel gets fv per (filtration, coord-fun) lane.
    w2_rep = jnp.repeat(params["w2"], NUM_CF, axis=1)                     # [24, 24]
    b2_rep = jnp.repeat(params["b2"], NUM_CF, axis=1)                     # [1, 24]

    def tile_f(p):                                                        # [1,3] -> [1,24]
        return jnp.tile(p, (1, NUM_FILT))

    def pad32(v):                                                         # [1,k] -> [1,32]
        return jnp.pad(v, ((0, 0), (0, 32 - v.shape[1])))

    rows = [
        pad32(params["b1"]),                                              # 0: b1
        pad32(b2_rep),                                                    # 1: b2 (replicated)
        pad32(tile_f(params["t_tri"])),                                   # 2: Triangle t
        pad32(tile_f(params["mu_b"])),                                    # 3: Gaussian mu_b
        pad32(tile_f(params["mu_d"])),                                    # 4: Gaussian mu_d
        pad32(tile_f(params["wl_b"] + params["wl_d"])),                   # 5: Line w_b + w_d
        pad32(tile_f(params["bl"])),                                      # 6: Line bias
        pad32(tile_f(params["c_rh"])),                                    # 7: RationalHat c
        pad32(jnp.broadcast_to(jnp.abs(params["r"]), (1, CF_WIDTH))),     # 8: |r|
        params["bout"],                                                   # 9: out bias (32 lanes)
    ]
    small_params = jnp.concatenate(
        rows + [jnp.zeros((16 - len(rows), 32), jnp.float32)], axis=0
    ).astype(jnp.float32)                                                 # [16, 32]

    # Split out.weight into per-block matrices matching the kernel's lane layouts.
    wout = params["wout"]                                                 # [128, 32]
    wx = wout[:FEATURES_IN]                                               # [32, 32]

    def family_weight(fam):                                               # [24, 32]
        idx = [FEATURES_IN + f * TOTAL_CF + fam * NUM_CF + j
               for f in range(NUM_FILT) for j in range(NUM_CF)]
        return wout[jnp.asarray(idx, jnp.int32)]

    wtri, wgauss, wline, wrhat = (family_weight(0), family_weight(1),
                                  family_weight(2), family_weight(3))

    # ---- tiling: big node tiles, no padding (Pallas masks the ragged last block) ----
    vmem_cap = _vmem_capacity_bytes()
    vmem_limit = int(min(vmem_cap - (8 << 20), 96 << 20))
    # Worst-case live f32 slabs per node row (every [TN,24/32] lane-pads to 128 lanes):
    # double-buffered x/out blocks + h + b + acc + the four coord-fun families + slack.
    bytes_per_row = 16 * 128 * 4
    cap_rows = max(8, (vmem_limit // bytes_per_row) // 8 * 8)
    tile_n = max(8, min(_round_up(int(tile_n), 8), cap_rows, _round_up(n, 8)))
    if n > 16:  # keep >=2 grid steps so ("parallel",) can use both v7x TensorCores
        tile_n = min(tile_n, _round_up(pl.cdiv(n, 2), 8))
    grid = (pl.cdiv(n, tile_n),)

    def full(shape):
        return pl.BlockSpec(shape, lambda i: (0,) * len(shape))

    in_specs = [
        pl.BlockSpec((tile_n, FEATURES_IN), lambda i: (i, 0)),            # x
        full((FEATURES_IN, FILT_HIDDEN)),                                 # w1
        full((FILT_HIDDEN, CF_WIDTH)),                                    # w2 replicated
        full((16, 32)),                                                   # packed small params
        full((FEATURES_IN, FEATURES_OUT)),                                # Wx
        full((CF_WIDTH, FEATURES_OUT)),                                   # Wtri
        full((CF_WIDTH, FEATURES_OUT)),                                   # Wgauss
        full((CF_WIDTH, FEATURES_OUT)),                                   # Wline
        full((CF_WIDTH, FEATURES_OUT)),                                   # Wrhat
    ]

    out = pl.pallas_call(
        _topology_kernel,
        out_shape=jax.ShapeDtypeStruct((n, FEATURES_OUT), jnp.float32),
        grid=grid,
        in_specs=in_specs,
        out_specs=pl.BlockSpec((tile_n, FEATURES_OUT), lambda i: (i, 0)),
        compiler_params=pltpu.CompilerParams(
            dimension_semantics=("parallel",),
            vmem_limit_bytes=vmem_limit),
    )(x, params["w1"], w2_rep, small_params, wx, wtri, wgauss, wline, wrhat)

    return out, None, None


def init_params(key):
    ks = jax.random.split(key, 8)

    def linear(k, fan_in, fan_out):
        lim = 1.0 / (fan_in ** 0.5)
        kw, kb = jax.random.split(k)
        w = jax.random.uniform(kw, (fan_in, fan_out), jnp.float32, -lim, lim)
        b = jax.random.uniform(kb, (1, fan_out), jnp.float32, -lim, lim)
        return w, b

    w1, b1 = linear(ks[0], FEATURES_IN, FILT_HIDDEN)
    w2, b2 = linear(ks[1], FILT_HIDDEN, NUM_FILT)

    t_tri = jax.random.normal(ks[2], (1, NUM_CF), jnp.float32)            # Triangle t_param
    mu = jax.random.normal(ks[3], (NUM_CF, 2), jnp.float32)               # Gaussian centers
    wl, bl = linear(ks[4], 2, NUM_CF)                                     # Line_transform Linear(2,3)
    c_rh = jax.random.normal(ks[5], (1, NUM_CF), jnp.float32)             # RationalHat centers
    r = jax.random.normal(ks[6], (1, 1), jnp.float32)                     # RationalHat r_param

    in_out_dim = FEATURES_IN + NUM_FILT * TOTAL_CF
    wout, bout = linear(ks[7], in_out_dim, FEATURES_OUT)

    return {
        "w1": w1, "b1": b1, "w2": w2, "b2": b2,
        "t_tri": t_tri,
        "mu_b": mu[:, 0].reshape(1, NUM_CF), "mu_d": mu[:, 1].reshape(1, NUM_CF),
        "wl_b": wl[0].reshape(1, NUM_CF), "wl_d": wl[1].reshape(1, NUM_CF), "bl": bl,
        "c_rh": c_rh, "r": r,
        "wout": wout, "bout": bout,
    }


def topology_layer_ref(x, p):
    """Pure-JAX reference of the same forward pass (original module layout, for verification)."""
    h = jnp.maximum(x @ p["w1"] + p["b1"], 0.0)
    fv = h @ p["w2"] + p["b2"]
    r_abs = jnp.abs(p["r"][0, 0])
    coords = []
    for f in range(NUM_FILT):
        b = fv[:, f:f + 1]
        d = b
        tri = jnp.maximum(d - jnp.abs(p["t_tri"] - b), 0.0)
        gauss = jnp.exp(-((b - p["mu_b"]) ** 2 + (d - p["mu_d"]) ** 2)
                        / (2.0 * GAUSS_SIGMA ** 2))
        line = b * p["wl_b"] + d * p["wl_d"] + p["bl"]
        n1 = jnp.abs(b - p["c_rh"]) + jnp.abs(d - p["c_rh"])
        rhat = 1.0 / (1.0 + n1) - 1.0 / (1.0 + jnp.abs(r_abs - n1))
        coords.append(jnp.concatenate([tri, gauss, line, rhat], axis=1))
    coord = jnp.concatenate(coords, axis=1)
    cat = jnp.concatenate([x, coord], axis=1)
    return jnp.maximum(cat @ p["wout"] + p["bout"], 0.0)


if __name__ == "__main__":
    key = jax.random.PRNGKey(0)
    kx, kp = jax.random.split(key)

    N = 100    # total nodes across the graph batch (exercises the ragged last block / no-pad path)
    x = jax.random.normal(kx, (N, FEATURES_IN), jnp.float32)
    params = init_params(kp)

    out, _, _ = topology_layer_forward(x, params)
    out = jax.block_until_ready(out)

    ref = topology_layer_ref(x, params)
    assert out.shape == (N, FEATURES_OUT)
    # Tolerance loosened vs. 1e-5: the RationalHat family now uses the EUP approximate
    # reciprocal (pl.reciprocal(approx=True)); any semantic bug would show errors >> 1e-2.
    assert jnp.allclose(out, ref, atol=1e-2, rtol=1e-2), float(jnp.max(jnp.abs(out - ref)))
    print("KERNEL_OK")
</pallas_src>

<mosaic_0001>
module attributes {stable_mosaic.version = 11 : i64} {
  func.func @_topology_kernel(%arg0: i32, %arg1: memref<56x32xf32, #tpu.memory_space<vmem>>, %arg2: memref<32x24xf32, #tpu.memory_space<vmem>>, %arg3: memref<24x24xf32, #tpu.memory_space<vmem>>, %arg4: memref<16x32xf32, #tpu.memory_space<vmem>>, %arg5: memref<32x32xf32, #tpu.memory_space<vmem>>, %arg6: memref<24x32xf32, #tpu.memory_space<vmem>>, %arg7: memref<24x32xf32, #tpu.memory_space<vmem>>, %arg8: memref<24x32xf32, #tpu.memory_space<vmem>>, %arg9: memref<24x32xf32, #tpu.memory_space<vmem>>, %arg10: memref<56x32xf32, #tpu.memory_space<vmem>>) attributes {dimension_semantics = [#tpu.dimension_semantics<parallel>], iteration_bounds = array<i64: 2>, scalar_prefetch = 0 : i64, scratch_operands = 0 : i64, tpu.core_type = #tpu.core_type<tc>, window_params = [{transform_indices = @transform_0, window_bounds = array<i64: 56, 32>}, {pipeline_mode = #tpu.pipeline_mode<synchronous>, transform_indices = @transform_1, window_bounds = array<i64: 32, 24>}, {pipeline_mode = #tpu.pipeline_mode<synchronous>, transform_indices = @transform_2, window_bounds = array<i64: 24, 24>}, {pipeline_mode = #tpu.pipeline_mode<synchronous>, transform_indices = @transform_3, window_bounds = array<i64: 16, 32>}, {pipeline_mode = #tpu.pipeline_mode<synchronous>, transform_indices = @transform_4, window_bounds = array<i64: 32, 32>}, {pipeline_mode = #tpu.pipeline_mode<synchronous>, transform_indices = @transform_5, window_bounds = array<i64: 24, 32>}, {pipeline_mode = #tpu.pipeline_mode<synchronous>, transform_indices = @transform_6, window_bounds = array<i64: 24, 32>}, {pipeline_mode = #tpu.pipeline_mode<synchronous>, transform_indices = @transform_7, window_bounds = array<i64: 24, 32>}, {pipeline_mode = #tpu.pipeline_mode<synchronous>, transform_indices = @transform_8, window_bounds = array<i64: 24, 32>}, {transform_indices = @transform_9, window_bounds = array<i64: 56, 32>}]} {
    %c0 = arith.constant 0 : index
    %c0_0 = arith.constant 0 : index
    %0 = vector.load %arg1[%c0, %c0_0] : memref<56x32xf32, #tpu.memory_space<vmem>>, vector<56x32xf32>
    %c0_1 = arith.constant 0 : index
    %c0_2 = arith.constant 0 : index
    %1 = vector.load %arg4[%c0_1, %c0_2] : memref<16x32xf32, #tpu.memory_space<vmem>>, vector<16x32xf32>
    %2 = vector.extract_strided_slice %1 {offsets = [0, 0], sizes = [1, 24], strides = [1, 1]} : vector<16x32xf32> to vector<1x24xf32>
    %3 = vector.extract_strided_slice %1 {offsets = [1, 0], sizes = [1, 24], strides = [1, 1]} : vector<16x32xf32> to vector<1x24xf32>
    %4 = vector.extract_strided_slice %1 {offsets = [2, 0], sizes = [1, 24], strides = [1, 1]} : vector<16x32xf32> to vector<1x24xf32>
    %5 = vector.extract_strided_slice %1 {offsets = [3, 0], sizes = [1, 24], strides = [1, 1]} : vector<16x32xf32> to vector<1x24xf32>
    %6 = vector.extract_strided_slice %1 {offsets = [4, 0], sizes = [1, 24], strides = [1, 1]} : vector<16x32xf32> to vector<1x24xf32>
    %7 = vector.extract_strided_slice %1 {offsets = [5, 0], sizes = [1, 24], strides = [1, 1]} : vector<16x32xf32> to vector<1x24xf32>
    %8 = vector.extract_strided_slice %1 {offsets = [6, 0], sizes = [1, 24], strides = [1, 1]} : vector<16x32xf32> to vector<1x24xf32>
    %9 = vector.extract_strided_slice %1 {offsets = [7, 0], sizes = [1, 24], strides = [1, 1]} : vector<16x32xf32> to vector<1x24xf32>
    %10 = vector.extract_strided_slice %1 {offsets = [8, 0], sizes = [1, 24], strides = [1, 1]} : vector<16x32xf32> to vector<1x24xf32>
    %11 = vector.extract_strided_slice %1 {offsets = [9, 0], sizes = [1, 32], strides = [1, 1]} : vector<16x32xf32> to vector<1x32xf32>
    %c0_3 = arith.constant 0 : index
    %c0_4 = arith.constant 0 : index
    %12 = vector.load %arg2[%c0_3, %c0_4] : memref<32x24xf32, #tpu.memory_space<vmem>>, vector<32x24xf32>
    %cst = arith.constant dense<0.000000e+00> : vector<56x24xf32>
    %13 = tpu.matmul %0, %12, %cst {dimension_numbers = #tpu.dot_dimension_numbers<[1], [0], [0], [1], [0, 0, 1, 1], [], []>} : vector<56x32xf32>, vector<32x24xf32>, vector<56x24xf32> -> vector<56x24xf32>
    %14 = vector.broadcast %2 : vector<1x24xf32> to vector<56x24xf32>
    %15 = arith.addf %13, %14 : vector<56x24xf32>
    %cst_5 = arith.constant 0.000000e+00 : f32
    %16 = vector.broadcast %cst_5 : f32 to vector<56x24xf32>
    %17 = arith.maximumf %15, %16 : vector<56x24xf32>
    %c0_6 = arith.constant 0 : index
    %c0_7 = arith.constant 0 : index
    %18 = vector.load %arg3[%c0_6, %c0_7] : memref<24x24xf32, #tpu.memory_space<vmem>>, vector<24x24xf32>
    %cst_8 = arith.constant dense<0.000000e+00> : vector<56x24xf32>
    %19 = tpu.matmul %17, %18, %cst_8 {dimension_numbers = #tpu.dot_dimension_numbers<[1], [0], [0], [1], [0, 0, 1, 1], [], []>} : vector<56x24xf32>, vector<24x24xf32>, vector<56x24xf32> -> vector<56x24xf32>
    %20 = vector.broadcast %3 : vector<1x24xf32> to vector<56x24xf32>
    %21 = arith.addf %19, %20 : vector<56x24xf32>
    %c0_9 = arith.constant 0 : index
    %c0_10 = arith.constant 0 : index
    %22 = vector.load %arg5[%c0_9, %c0_10] : memref<32x32xf32, #tpu.memory_space<vmem>>, vector<32x32xf32>
    %cst_11 = arith.constant dense<0.000000e+00> : vector<56x32xf32>
    %23 = tpu.matmul %0, %22, %cst_11 {dimension_numbers = #tpu.dot_dimension_numbers<[1], [0], [0], [1], [0, 0, 1, 1], [], []>} : vector<56x32xf32>, vector<32x32xf32>, vector<56x32xf32> -> vector<56x32xf32>
    %24 = vector.broadcast %4 : vector<1x24xf32> to vector<56x24xf32>
    %25 = arith.subf %24, %21 : vector<56x24xf32>
    %26 = math.absf %25 : vector<56x24xf32>
    %27 = arith.subf %21, %26 : vector<56x24xf32>
    %cst_12 = arith.constant 0.000000e+00 : f32
    %28 = vector.broadcast %cst_12 : f32 to vector<56x24xf32>
    %29 = arith.maximumf %27, %28 : vector<56x24xf32>
    %c0_13 = arith.constant 0 : index
    %c0_14 = arith.constant 0 : index
    %30 = vector.load %arg6[%c0_13, %c0_14] : memref<24x32xf32, #tpu.memory_space<vmem>>, vector<24x32xf32>
    %cst_15 = arith.constant dense<0.000000e+00> : vector<56x32xf32>
    %31 = tpu.matmul %29, %30, %cst_15 {dimension_numbers = #tpu.dot_dimension_numbers<[1], [0], [0], [1], [0, 0, 1, 1], [], []>} : vector<56x24xf32>, vector<24x32xf32>, vector<56x32xf32> -> vector<56x32xf32>
    %32 = arith.addf %23, %31 : vector<56x32xf32>
    %33 = vector.broadcast %5 : vector<1x24xf32> to vector<56x24xf32>
    %34 = arith.subf %21, %33 : vector<56x24xf32>
    %35 = arith.mulf %34, %34 : vector<56x24xf32>
    %36 = vector.broadcast %6 : vector<1x24xf32> to vector<56x24xf32>
    %37 = arith.subf %21, %36 : vector<56x24xf32>
    %38 = arith.mulf %37, %37 : vector<56x24xf32>
    %39 = arith.addf %35, %38 : vector<56x24xf32>
    %cst_16 = arith.constant 0.000000e+00 : f32
    %40 = vector.broadcast %cst_16 : f32 to vector<56x24xf32>
    %41 = arith.subf %40, %39 : vector<56x24xf32>
    %cst_17 = arith.constant 5.000000e+01 : f32
    %42 = vector.broadcast %cst_17 : f32 to vector<56x24xf32>
    %43 = arith.mulf %41, %42 : vector<56x24xf32>
    %44 = math.exp %43 : vector<56x24xf32>
    %c0_18 = arith.constant 0 : index
    %c0_19 = arith.constant 0 : index
    %45 = vector.load %arg7[%c0_18, %c0_19] : memref<24x32xf32, #tpu.memory_space<vmem>>, vector<24x32xf32>
    %cst_20 = arith.constant dense<0.000000e+00> : vector<56x32xf32>
    %46 = tpu.matmul %44, %45, %cst_20 {dimension_numbers = #tpu.dot_dimension_numbers<[1], [0], [0], [1], [0, 0, 1, 1], [], []>} : vector<56x24xf32>, vector<24x32xf32>, vector<56x32xf32> -> vector<56x32xf32>
    %47 = arith.addf %32, %46 : vector<56x32xf32>
    %48 = vector.broadcast %7 : vector<1x24xf32> to vector<56x24xf32>
    %49 = arith.mulf %21, %48 : vector<56x24xf32>
    %50 = vector.broadcast %8 : vector<1x24xf32> to vector<56x24xf32>
    %51 = arith.addf %49, %50 : vector<56x24xf32>
    %c0_21 = arith.constant 0 : index
    %c0_22 = arith.constant 0 : index
    %52 = vector.load %arg8[%c0_21, %c0_22] : memref<24x32xf32, #tpu.memory_space<vmem>>, vector<24x32xf32>
    %cst_23 = arith.constant dense<0.000000e+00> : vector<56x32xf32>
    %53 = tpu.matmul %51, %52, %cst_23 {dimension_numbers = #tpu.dot_dimension_numbers<[1], [0], [0], [1], [0, 0, 1, 1], [], []>} : vector<56x24xf32>, vector<24x32xf32>, vector<56x32xf32> -> vector<56x32xf32>
    %54 = arith.addf %47, %53 : vector<56x32xf32>
    %55 = vector.broadcast %9 : vector<1x24xf32> to vector<56x24xf32>
    %56 = arith.subf %21, %55 : vector<56x24xf32>
    %57 = math.absf %56 : vector<56x24xf32>
    %cst_24 = arith.constant 2.000000e+00 : f32
    %58 = vector.broadcast %cst_24 : f32 to vector<56x24xf32>
    %59 = arith.mulf %58, %57 : vector<56x24xf32>
    %cst_25 = arith.constant 1.000000e+00 : f32
    %60 = vector.broadcast %cst_25 : f32 to vector<56x24xf32>
    %61 = arith.addf %60, %59 : vector<56x24xf32>
    %62 = tpu.reciprocal %61 {approx = true} : vector<56x24xf32> -> vector<56x24xf32>
    %63 = vector.broadcast %10 : vector<1x24xf32> to vector<56x24xf32>
    %64 = arith.subf %63, %59 : vector<56x24xf32>
    %65 = math.absf %64 : vector<56x24xf32>
    %cst_26 = arith.constant 1.000000e+00 : f32
    %66 = vector.broadcast %cst_26 : f32 to vector<56x24xf32>
    %67 = arith.addf %66, %65 : vector<56x24xf32>
    %68 = tpu.reciprocal %67 {approx = true} : vector<56x24xf32> -> vector<56x24xf32>
    %69 = arith.subf %62, %68 : vector<56x24xf32>
    %c0_27 = arith.constant 0 : index
    %c0_28 = arith.constant 0 : index
    %70 = vector.load %arg9[%c0_27, %c0_28] : memref<24x32xf32, #tpu.memory_space<vmem>>, vector<24x32xf32>
    %cst_29 = arith.constant dense<0.000000e+00> : vector<56x32xf32>
    %71 = tpu.matmul %69, %70, %cst_29 {dimension_numbers = #tpu.dot_dimension_numbers<[1], [0], [0], [1], [0, 0, 1, 1], [], []>} : vector<56x24xf32>, vector<24x32xf32>, vector<56x32xf32> -> vector<56x32xf32>
    %72 = arith.addf %54, %71 : vector<56x32xf32>
    %73 = vector.broadcast %11 : vector<1x32xf32> to vector<56x32xf32>
    %74 = arith.addf %72, %73 : vector<56x32xf32>
    %cst_30 = arith.constant 0.000000e+00 : f32
    %75 = vector.broadcast %cst_30 : f32 to vector<56x32xf32>
    %76 = arith.maximumf %74, %75 : vector<56x32xf32>
    %c0_31 = arith.constant 0 : index
    %c0_32 = arith.constant 0 : index
    %77 = vector.load %arg10[%c0_31, %c0_32] : memref<56x32xf32, #tpu.memory_space<vmem>>, vector<56x32xf32>
    tpu.vector_store %arg10[%c0_31, %c0_32], %76 {strides = array<i32>} : memref<56x32xf32, #tpu.memory_space<vmem>>, vector<56x32xf32>,
    return
  }
  func.func @transform_0(%arg0: i32) -> (i32, i32) {
    %c0_i32 = arith.constant 0 : i32
    %c0_i32_0 = arith.constant 0 : i32
    return %arg0, %c0_i32 : i32, i32
  }
  func.func @transform_1(%arg0: i32) -> (i32, i32) {
    %c0_i32 = arith.constant 0 : i32
    %c0_i32_0 = arith.constant 0 : i32
    %c0_i32_1 = arith.constant 0 : i32
    return %c0_i32, %c0_i32_0 : i32, i32
  }
  func.func @transform_2(%arg0: i32) -> (i32, i32) {
    %c0_i32 = arith.constant 0 : i32
    %c0_i32_0 = arith.constant 0 : i32
    %c0_i32_1 = arith.constant 0 : i32
    return %c0_i32, %c0_i32_0 : i32, i32
  }
  func.func @transform_3(%arg0: i32) -> (i32, i32) {
    %c0_i32 = arith.constant 0 : i32
    %c0_i32_0 = arith.constant 0 : i32
    %c0_i32_1 = arith.constant 0 : i32
    return %c0_i32, %c0_i32_0 : i32, i32
  }
  func.func @transform_4(%arg0: i32) -> (i32, i32) {
    %c0_i32 = arith.constant 0 : i32
    %c0_i32_0 = arith.constant 0 : i32
    %c0_i32_1 = arith.constant 0 : i32
    return %c0_i32, %c0_i32_0 : i32, i32
  }
  func.func @transform_5(%arg0: i32) -> (i32, i32) {
    %c0_i32 = arith.constant 0 : i32
    %c0_i32_0 = arith.constant 0 : i32
    %c0_i32_1 = arith.constant 0 : i32
    return %c0_i32, %c0_i32_0 : i32, i32
  }
  func.func @transform_6(%arg0: i32) -> (i32, i32) {
    %c0_i32 = arith.constant 0 : i32
    %c0_i32_0 = arith.constant 0 : i32
    %c0_i32_1 = arith.constant 0 : i32
    return %c0_i32, %c0_i32_0 : i32, i32
  }
  func.func @transform_7(%arg0: i32) -> (i32, i32) {
    %c0_i32 = arith.constant 0 : i32
    %c0_i32_0 = arith.constant 0 : i32
    %c0_i32_1 = arith.constant 0 : i32
    return %c0_i32, %c0_i32_0 : i32, i32
  }
  func.func @transform_8(%arg0: i32) -> (i32, i32) {
    %c0_i32 = arith.constant 0 : i32
    %c0_i32_0 = arith.constant 0 : i32
    %c0_i32_1 = arith.constant 0 : i32
    return %c0_i32, %c0_i32_0 : i32, i32
  }
  func.func @transform_9(%arg0: i32) -> (i32, i32) {
    %c0_i32 = arith.constant 0 : i32
    %c0_i32_0 = arith.constant 0 : i32
    return %arg0, %c0_i32 : i32, i32
  }
}

</mosaic_0001>

<llo_original>
// kernel: tpu_custom_call.1
$region0: #{tpu_custom_call.1}
  #allocation0 [shape = 'u32[]', space=smem, size = 0x4, offset = 0x4, fixed_abs, tag = 'smem constant byte address 0x4 - core index']
  #allocation1 [shape = 'u32[144,128]{1,0:T(1,128)}', space=vmem, size = 0x12000, scoped, tag = 'internal scratch']
  %s0 = inlined_call_operand.vmem [shape: f32[100,32], index: 0, kind: input, shape index: {}]
  %s1 = inlined_call_operand.vmem [shape: f32[32,24], index: 1, kind: input, shape index: {}]
  %s2 = inlined_call_operand.vmem [shape: f32[24,24], index: 2, kind: input, shape index: {}]
  %s3 = inlined_call_operand.vmem [shape: f32[16,32], index: 3, kind: input, shape index: {}]
  %s4 = inlined_call_operand.vmem [shape: f32[32,32], index: 4, kind: input, shape index: {}]
  %s5 = inlined_call_operand.vmem [shape: f32[24,32], index: 5, kind: input, shape index: {}]
  %s6 = inlined_call_operand.vmem [shape: f32[24,32], index: 6, kind: input, shape index: {}]
  %s7 = inlined_call_operand.vmem [shape: f32[24,32], index: 7, kind: input, shape index: {}]
  %s8 = inlined_call_operand.vmem [shape: f32[24,32], index: 8, kind: input, shape index: {}]
  %s9 = inlined_call_operand.vmem [shape: f32[100,32], index: 9, kind: output, shape index: {}]
  %s10 = sld [smem:[#allocation0]]
  $region117: #{tpu_custom_call.1} parent=0
    _
  %s12 = ssub.s32 1, %s10
  %s13 = scalar_select 0, %s12, %s10
  $region1: #{tpu_custom_call.1} parent=0
    #allocation2 [shape = 'u8[57344]{0}', space=vmem, size = 0xe000, scoped, tag = 'output window, operand 0']
    loop: start=0, step=1, limit=4
    $region2: #{tpu_custom_call.1} parent=1 // loop_pre_header
      _
    $region3: #{tpu_custom_call.1} parent=1 // loop_header
      %s15 = sphi 0, %s19
      %p16 = scmp.ge.s32.totalorder %s15, 4
      %s25 = sphi 0, %s27
      %s28 = sphi 0, %s25
      %s29 = sphi 0, %s28
      %s45 = sphi 0, %s29
      %s49 = sphi 0, %s49
      %s51 = sphi 0, %s49
      %s52 = sphi 0, %s51
      %s66 = sphi 0, %s52
      %s70 = sphi 0, %s70
      %s72 = sphi 0, %s70
      %s73 = sphi 0, %s72
      %s87 = sphi 0, %s73
      %s91 = sphi 0, %s91
      %s93 = sphi 0, %s91
      %s94 = sphi 0, %s93
      %s108 = sphi 0, %s94
      %s112 = sphi 0, %s112
      %s114 = sphi 0, %s112
      %s115 = sphi 0, %s114
      %s129 = sphi 0, %s115
      %s133 = sphi 0, %s133
      %s135 = sphi 0, %s133
      %s136 = sphi 0, %s135
      %s150 = sphi 0, %s136
      %s154 = sphi 0, %s154
      %s156 = sphi 0, %s154
      %s157 = sphi 0, %s156
      %s171 = sphi 0, %s157
      %s175 = sphi 0, %s175
      %s177 = sphi 0, %s175
      %s178 = sphi 0, %s177
      %s192 = sphi 0, %s178
      %s196 = sphi 0, %s196
      %s198 = sphi 0, %s196
      %s199 = sphi 0, %s198
      %s213 = sphi 0, %s199
      %s219 = sphi 0, %s221
      %s222 = sphi 0, %s219
      %s223 = sphi 0, %s222
      %s239 = sphi 0, %s223
    $region4: #{tpu_custom_call.1} parent=1 // loop_header_branch
      %18 = sbr.rel (%p16) target = $region8
    $region5: #{tpu_custom_call.1} parent=1 // loop_body
      %s20 = ssub.s32 %s15, 1
      %s21 = ssub.s32 %s15, 2
      %s22 = sadd.s32 %s15, 1
      %s23 = ssub.s32 %s15, %s22
      %p24 = scmp.eq.s32.totalorder %s23, 0
      %s26 = sadd.s32 %s25, 1
      %s27 = scalar_select %p24, %s25, %s26
      %p30 = pneg %p24
      %p31 = scmp.eq.s32.totalorder %s15, 1
      %p32 = por %p30, %p31
      %p33 = scmp.ne.s32.totalorder %s25, %s28
      %p34 = scmp.eq.s32.totalorder %s15, 0
      %p35 = por %p33, %p34
      %p36 = scmp.ne.s32.totalorder %s25, %s28
      %p37 = scmp.eq.s32.totalorder %s20, 1
      %p38 = por %p36, %p37
      %p39 = scmp.ne.s32.totalorder %s28, %s29
      %p40 = scmp.eq.s32.totalorder %s20, 0
      %p41 = por %p39, %p40
      %p42 = scmp.ne.s32.totalorder %s28, %s29
      %p43 = scmp.eq.s32.totalorder %s21, 1
      %p44 = por %p42, %p43
      %p46 = scmp.ne.s32.totalorder %s29, %s45
      %p47 = scmp.eq.s32.totalorder %s21, 0
      %p48 = por %p46, %p47
      %s50 = sadd.s32 %s49, 1
      %p53 = scmp.eq.s32.totalorder %s15, 1
      %p54 = scmp.ne.s32.totalorder %s49, %s51
      %p55 = scmp.eq.s32.totalorder %s15, 0
      %p56 = por %p54, %p55
      %p57 = scmp.ne.s32.totalorder %s49, %s51
      %p58 = scmp.eq.s32.totalorder %s20, 1
      %p59 = por %p57, %p58
      %p60 = scmp.ne.s32.totalorder %s51, %s52
      %p61 = scmp.eq.s32.totalorder %s20, 0
      %p62 = por %p60, %p61
      %p63 = scmp.ne.s32.totalorder %s51, %s52
      %p64 = scmp.eq.s32.totalorder %s21, 1
      %p65 = por %p63, %p64
      %p67 = scmp.ne.s32.totalorder %s52, %s66
      %p68 = scmp.eq.s32.totalorder %s21, 0
      %p69 = por %p67, %p68
      %s71 = sadd.s32 %s70, 1
      %p74 = scmp.eq.s32.totalorder %s15, 1
      %p75 = scmp.ne.s32.totalorder %s70, %s72
      %p76 = scmp.eq.s32.totalorder %s15, 0
      %p77 = por %p75, %p76
      %p78 = scmp.ne.s32.totalorder %s70, %s72
      %p79 = scmp.eq.s32.totalorder %s20, 1
      %p80 = por %p78, %p79
      %p81 = scmp.ne.s32.totalorder %s72, %s73
      %p82 = scmp.eq.s32.totalorder %s20, 0
      %p83 = por %p81, %p82
      %p84 = scmp.ne.s32.totalorder %s72, %s73
      %p85 = scmp.eq.s32.totalorder %s21, 1
      %p86 = por %p84, %p85
      %p88 = scmp.ne.s32.totalorder %s73, %s87
      %p89 = scmp.eq.s32.totalorder %s21, 0
      %p90 = por %p88, %p89
      %s92 = sadd.s32 %s91, 1
      %p95 = scmp.eq.s32.totalorder %s15, 1
      %p96 = scmp.ne.s32.totalorder %s91, %s93
      %p97 = scmp.eq.s32.totalorder %s15, 0
      %p98 = por %p96, %p97
      %p99 = scmp.ne.s32.totalorder %s91, %s93
      %p100 = scmp.eq.s32.totalorder %s20, 1
      %p101 = por %p99, %p100
      %p102 = scmp.ne.s32.totalorder %s93, %s94
      %p103 = scmp.eq.s32.totalorder %s20, 0
      %p104 = por %p102, %p103
      %p105 = scmp.ne.s32.totalorder %s93, %s94
      %p106 = scmp.eq.s32.totalorder %s21, 1
      %p107 = por %p105, %p106
      %p109 = scmp.ne.s32.totalorder %s94, %s108
      %p110 = scmp.eq.s32.totalorder %s21, 0
      %p111 = por %p109, %p110
      %s113 = sadd.s32 %s112, 1
      %p116 = scmp.eq.s32.totalorder %s15, 1
      %p117 = scmp.ne.s32.totalorder %s112, %s114
      %p118 = scmp.eq.s32.totalorder %s15, 0
      %p119 = por %p117, %p118
      %p120 = scmp.ne.s32.totalorder %s112, %s114
      %p121 = scmp.eq.s32.totalorder %s20, 1
      %p122 = por %p120, %p121
      %p123 = scmp.ne.s32.totalorder %s114, %s115
      %p124 = scmp.eq.s32.totalorder %s20, 0
      %p125 = por %p123, %p124
      %p126 = scmp.ne.s32.totalorder %s114, %s115
      %p127 = scmp.eq.s32.totalorder %s21, 1
      %p128 = por %p126, %p127
      %p130 = scmp.ne.s32.totalorder %s115, %s129
      %p131 = scmp.eq.s32.totalorder %s21, 0
      %p132 = por %p130, %p131
      %s134 = sadd.s32 %s133, 1
      %p137 = scmp.eq.s32.totalorder %s15, 1
      %p138 = scmp.ne.s32.totalorder %s133, %s135
      %p139 = scmp.eq.s32.totalorder %s15, 0
      %p140 = por %p138, %p139
      %p141 = scmp.ne.s32.totalorder %s133, %s135
      %p142 = scmp.eq.s32.totalorder %s20, 1
      %p143 = por %p141, %p142
      %p144 = scmp.ne.s32.totalorder %s135, %s136
      %p145 = scmp.eq.s32.totalorder %s20, 0
      %p146 = por %p144, %p145
      %p147 = scmp.ne.s32.totalorder %s135, %s136
      %p148 = scmp.eq.s32.totalorder %s21, 1
      %p149 = por %p147, %p148
      %p151 = scmp.ne.s32.totalorder %s136, %s150
      %p152 = scmp.eq.s32.totalorder %s21, 0
      %p153 = por %p151, %p152
      %s155 = sadd.s32 %s154, 1
      %p158 = scmp.eq.s32.totalorder %s15, 1
      %p159 = scmp.ne.s32.totalorder %s154, %s156
      %p160 = scmp.eq.s32.totalorder %s15, 0
      %p161 = por %p159, %p160
      %p162 = scmp.ne.s32.totalorder %s154, %s156
      %p163 = scmp.eq.s32.totalorder %s20, 1
      %p164 = por %p162, %p163
      %p165 = scmp.ne.s32.totalorder %s156, %s157
      %p166 = scmp.eq.s32.totalorder %s20, 0
      %p167 = por %p165, %p166
      %p168 = scmp.ne.s32.totalorder %s156, %s157
      %p169 = scmp.eq.s32.totalorder %s21, 1
      %p170 = por %p168, %p169
      %p172 = scmp.ne.s32.totalorder %s157, %s171
      %p173 = scmp.eq.s32.totalorder %s21, 0
      %p174 = por %p172, %p173
      %s176 = sadd.s32 %s175, 1
      %p179 = scmp.eq.s32.totalorder %s15, 1
      %p180 = scmp.ne.s32.totalorder %s175, %s177
      %p181 = scmp.eq.s32.totalorder %s15, 0
      %p182 = por %p180, %p181
      %p183 = scmp.ne.s32.totalorder %s175, %s177
      %p184 = scmp.eq.s32.totalorder %s20, 1
      %p185 = por %p183, %p184
      %p186 = scmp.ne.s32.totalorder %s177, %s178
      %p187 = scmp.eq.s32.totalorder %s20, 0
      %p188 = por %p186, %p187
      %p189 = scmp.ne.s32.totalorder %s177, %s178
      %p190 = scmp.eq.s32.totalorder %s21, 1
      %p191 = por %p189, %p190
      %p193 = scmp.ne.s32.totalorder %s178, %s192
      %p194 = scmp.eq.s32.totalorder %s21, 0
      %p195 = por %p193, %p194
      %s197 = sadd.s32 %s196, 1
      %p200 = scmp.eq.s32.totalorder %s15, 1
      %p201 = scmp.ne.s32.totalorder %s196, %s198
      %p202 = scmp.eq.s32.totalorder %s15, 0
      %p203 = por %p201, %p202
      %p204 = scmp.ne.s32.totalorder %s196, %s198
      %p205 = scmp.eq.s32.totalorder %s20, 1
      %p206 = por %p204, %p205
      %p207 = scmp.ne.s32.totalorder %s198, %s199
      %p208 = scmp.eq.s32.totalorder %s20, 0
      %p209 = por %p207, %p208
      %p210 = scmp.ne.s32.totalorder %s198, %s199
      %p211 = scmp.eq.s32.totalorder %s21, 1
      %p212 = por %p210, %p211
      %p214 = scmp.ne.s32.totalorder %s199, %s213
      %p215 = scmp.eq.s32.totalorder %s21, 0
      %p216 = por %p214, %p215
      %s217 = ssub.s32 %s15, %s22
      %p218 = scmp.eq.s32.totalorder %s217, 0
      %s220 = sadd.s32 %s219, 1
      %s221 = scalar_select %p218, %s219, %s220
      %p224 = pneg %p218
      %p225 = scmp.eq.s32.totalorder %s15, 1
      %p226 = por %p224, %p225
      %p227 = scmp.ne.s32.totalorder %s219, %s222
      %p228 = scmp.eq.s32.totalorder %s15, 0
      %p229 = por %p227, %p228
      %p230 = scmp.ne.s32.totalorder %s219, %s222
      %p231 = scmp.eq.s32.totalorder %s20, 1
      %p232 = por %p230, %p231
      %p233 = scmp.ne.s32.totalorder %s222, %s223
      %p234 = scmp.eq.s32.totalorder %s20, 0
      %p235 = por %p233, %p234
      %p236 = scmp.ne.s32.totalorder %s222, %s223
      %p237 = scmp.eq.s32.totalorder %s21, 1
      %p238 = por %p236, %p237
      %p240 = scmp.ne.s32.totalorder %s223, %s239
      %p241 = scmp.eq.s32.totalorder %s21, 0
      %p242 = por %p240, %p241
      %p243 = scmp.le.s32.totalorder 1, %s15
      %p244 = scmp.lt.s32.totalorder %s15, 3
      %p245 = pnand %p243, %p244
      %p246 = pneg %p245
      // Predicated region
      $region9: #{tpu_custom_call.1} parent=5 // pred_check
        _
      $region10: #{tpu_custom_call.1} parent=5 // pred_check_branch
        %248 = sbr.rel (%p245) target = $region12
      $region11: #{tpu_custom_call.1} parent=5 // pred_region
        %s249 = ssub.s32 %s15, 1
        // Predicated region
        $region13: #{tpu_custom_call.1} parent=11 // pred_check
          %p250 = pneg %p62
        $region14: #{tpu_custom_call.1} parent=11 // pred_check_branch
          %252 = sbr.rel (%p250) target = $region16
        $region15: #{tpu_custom_call.1} parent=11 // pred_region
          _
        $region16: #{tpu_custom_call.1} parent=11 // pred_fallthru
          _
        // Predicated region
        $region17: #{tpu_custom_call.1} parent=11 // pred_check
          %p253 = pneg %p83
        $region18: #{tpu_custom_call.1} parent=11 // pred_check_branch
          %255 = sbr.rel (%p253) target = $region20
        $region19: #{tpu_custom_call.1} parent=11 // pred_region
          _
        $region20: #{tpu_custom_call.1} parent=11 // pred_fallthru
          _
        // Predicated region
        $region21: #{tpu_custom_call.1} parent=11 // pred_check
          %p256 = pneg %p104
        $region22: #{tpu_custom_call.1} parent=11 // pred_check_branch
          %258 = sbr.rel (%p256) target = $region24
        $region23: #{tpu_custom_call.1} parent=11 // pred_region
          _
        $region24: #{tpu_custom_call.1} parent=11 // pred_fallthru
          _
        // Predicated region
        $region25: #{tpu_custom_call.1} parent=11 // pred_check
          %p259 = pneg %p125
        $region26: #{tpu_custom_call.1} parent=11 // pred_check_branch
          %261 = sbr.rel (%p259) target = $region28
        $region27: #{tpu_custom_call.1} parent=11 // pred_region
          _
        $region28: #{tpu_custom_call.1} parent=11 // pred_fallthru
          _
        // Predicated region
        $region29: #{tpu_custom_call.1} parent=11 // pred_check
          %p262 = pneg %p146
        $region30: #{tpu_custom_call.1} parent=11 // pred_check_branch
          %264 = sbr.rel (%p262) target = $region32
        $region31: #{tpu_custom_call.1} parent=11 // pred_region
          _
        $region32: #{tpu_custom_call.1} parent=11 // pred_fallthru
          _
        // Predicated region
        $region33: #{tpu_custom_call.1} parent=11 // pred_check
          %p265 = pneg %p167
        $region34: #{tpu_custom_call.1} parent=11 // pred_check_branch
          %267 = sbr.rel (%p265) target = $region36
        $region35: #{tpu_custom_call.1} parent=11 // pred_region
          _
        $region36: #{tpu_custom_call.1} parent=11 // pred_fallthru
          _
        // Predicated region
        $region37: #{tpu_custom_call.1} parent=11 // pred_check
          %p268 = pneg %p188
        $region38: #{tpu_custom_call.1} parent=11 // pred_check_branch
          %270 = sbr.rel (%p268) target = $region40
        $region39: #{tpu_custom_call.1} parent=11 // pred_region
          _
        $region40: #{tpu_custom_call.1} parent=11 // pred_fallthru
          _
        // Predicated region
        $region41: #{tpu_custom_call.1} parent=11 // pred_check
          %p271 = pneg %p209
        $region42: #{tpu_custom_call.1} parent=11 // pred_check_branch
          %273 = sbr.rel (%p271) target = $region44
        $region43: #{tpu_custom_call.1} parent=11 // pred_region
          _
        $region44: #{tpu_custom_call.1} parent=11 // pred_fallthru
          _
      $region12: #{tpu_custom_call.1} parent=5 // pred_fallthru
        _
      %p274 = scmp.lt.s32.totalorder %s15, 2
      // Predicated region
      $region45: #{tpu_custom_call.1} parent=5 // pred_check
        %p275 = pneg %p274
      $region46: #{tpu_custom_call.1} parent=5 // pred_check_branch
        %277 = sbr.rel (%p275) target = $region48
      $region47: #{tpu_custom_call.1} parent=5 // pred_region
        // Predicated region
        $region49: #{tpu_custom_call.1} parent=47 // pred_check
          %p278 = pneg %p35
        $region50: #{tpu_custom_call.1} parent=47 // pred_check_branch
          %280 = sbr.rel (%p278) target = $region52
        $region51: #{tpu_custom_call.1} parent=47 // pred_region
          %s281 = smul.u32 7, %s15
          %s282 = ssub.s32 13, %s281
          %p283 = scmp.lt.s32.totalorder %s282, 7
          %s284 = scalar_select %p283, %s282, 7
          %s285 = smul.u32 128, %s284
          %p286 = scmp.lt.s32.totalorder %s281, 12
          %s287 = scalar_select %p286, %s281, 12
          %s288 = smul.addr %s287, 8
          %s289 = scalar_lea.vmem %s0, %s288
          %s290 = smul.u32 7, %s15
          %s291 = ssub.s32 13, %s290
          %p292 = scmp.lt.s32.totalorder %s291, 7
          %s293 = scalar_select %p292, %s291, 7
          %s294 = smul.u32 128, %s293
        $region52: #{tpu_custom_call.1} parent=47 // pred_fallthru
          _
      $region48: #{tpu_custom_call.1} parent=5 // pred_fallthru
        _
      %p295 = scmp.le.s32.totalorder 1, %s15
      %p296 = scmp.lt.s32.totalorder %s15, 3
      %p297 = pnand %p295, %p296
      %p298 = pneg %p297
      // Predicated region
      $region53: #{tpu_custom_call.1} parent=5 // pred_check
        _
      $region54: #{tpu_custom_call.1} parent=5 // pred_check_branch
        %300 = sbr.rel (%p297) target = $region56
      $region55: #{tpu_custom_call.1} parent=5 // pred_region
        %s301 = ssub.s32 %s15, 1
        %s302 = smul.u32 7, %s20
        %s303 = ssub.s32 13, %s302
        %p304 = scmp.lt.s32.totalorder %s303, 7
        %s305 = scalar_select %p304, %s303, 7
        %s306 = smul.u32 128, %s305
        %p307 = scmp.lt.s32.totalorder %s302, 12
        %s308 = scalar_select %p307, %s302, 12
        %s309 = smul.addr %s308, 8
        %s310 = scalar_lea.vmem %s0, %s309
        %p311 = pneg %p41
        %p312 = pneg %p38
        %p313 = pneg %p62
        %p314 = pneg %p59
        %p315 = pneg %p83
        %p316 = pneg %p80
        %p317 = pneg %p104
        %p318 = pneg %p101
        %p319 = pneg %p125
        %p320 = pneg %p122
        %p321 = pneg %p146
        %p322 = pneg %p143
        %p323 = pneg %p167
        %p324 = pneg %p164
        %p325 = pneg %p188
        %p326 = pneg %p185
        %p327 = pneg %p209
        %p328 = pneg %p206
        %p329 = pneg %p235
        %p330 = pneg %p232
        %s331 = sand.u32 %s222, 1
        %s332 = sand.u32 %s222, 1
        %s333 = smul.addr %s332, 56
        %s334 = scalar_lea.vmem [#allocation2], %s333
        %s335 = smul.u32 7, %s20
        %s336 = ssub.s32 13, %s335
        %p337 = scmp.lt.s32.totalorder %s336, 7
        %s338 = scalar_select %p337, %s336, 7
        %s339 = smul.u32 128, %s338
        %p340 = scmp.lt.s32.totalorder %s335, 12
        %s341 = scalar_select %p340, %s335, 12
        %s342 = smul.addr %s341, 8
        %s343 = scalar_lea.vmem %s0, %s342
        %s344 = smul.u32 7, %s20
        %s345 = ssub.s32 13, %s344
        %p346 = scmp.lt.s32.totalorder %s345, 7
        %s347 = scalar_select %p346, %s345, 7
        %s348 = smul.u32 128, %s347
        %s349 = smul.u32 7, %s20
        %s350 = ssub.s32 13, %s349
        %p351 = scmp.lt.s32.totalorder %s350, 7
        %s352 = scalar_select %p351, %s350, 7
        %s353 = smul.u32 128, %s352
        %v354 = vld [vmem:[%s343] sm:$0xff]
        %v355 = vld [vmem:[%s343 + $0x8] sm:$0xff]
        %v356 = vld [vmem:[%s343 + $0x10] sm:$0xff]
        %v357 = vld [vmem:[%s343 + $0x18] sm:$0xff]
        %v358 = vld [vmem:[%s343 + $0x20] sm:$0xff]
        %v359 = vld [vmem:[%s343 + $0x28] sm:$0xff]
        %v360 = vld [vmem:[%s343 + $0x30] sm:$0xff]
        %v361 = vld [vmem:[%s3] sm:$0xff]
        %v362 = vld [vmem:[%s3 + $0x8] sm:$0xff]
        %v363 = vld [vmem:[%s1] sm:$0xff]
        %v364 = vld [vmem:[%s1 + $0x8] sm:$0xff]
        %v365 = vld [vmem:[%s1 + $0x10] sm:$0xff]
        %v366 = vld [vmem:[%s1 + $0x18] sm:$0xff]
        %v367 = vlaneseq
        %v368 = vshrl.u32 %v367, 7
        %v369 = vsub.s32 0, %v368
        %v370 = vrot.slane %v361, %v369
        %vm371 = vcmask 261120
        %v373 = vsel %vm371, %v354, 0
        %v376 = vsel %vm371, %v355, 0
        %v379 = vsel %vm371, %v356, 0
        %v382 = vsel %vm371, %v357, 0
        %v385 = vsel %vm371, %v358, 0
        %v388 = vsel %vm371, %v359, 0
        %v391 = vsel %vm371, %v360, 0
        %393 = vmatprep.subr.mxu0 0.0
        %394 = vmatpush1.msra.mxu0 %v363
        %395 = vmatprep.subr.mxu0 0.0
        %396 = vmatpush1.msra.mxu0 %v364
        %397 = vmatprep.subr.mxu0 0.0
        %398 = vmatpush1.msra.mxu0 %v365
        %399 = vmatprep.subr.mxu0 0.0
        %400 = vmatpush1.msra.mxu0 %v366
        %401 = vmatprep.subr.mxu0 0.0
        %402 = vmatpush1.msra.mxu0 0.0
        %403 = vmatprep.subr.mxu0 0.0
        %404 = vmatpush1.msra.mxu0 0.0
        %405 = vmatprep.subr.mxu0 0.0
        %406 = vmatpush1.msra.mxu0 0.0
        %407 = vmatprep.subr.mxu0 0.0
        %408 = vmatpush1.msra.mxu0 0.0
        %409 = vmatprep.subr.mxu0 0.0
        %410 = vmatpush1.msra.mxu0 0.0
        %411 = vmatprep.subr.mxu0 0.0
        %412 = vmatpush1.msra.mxu0 0.0
        %413 = vmatprep.subr.mxu0 0.0
        %414 = vmatpush1.msra.mxu0 0.0
        %415 = vmatprep.subr.mxu0 0.0
        %416 = vmatpush1.msra.mxu0 0.0
        %417 = vmatprep.subr.mxu0 0.0
        %418 = vmatpush1.msra.mxu0 0.0
        %419 = vmatprep.subr.mxu0 0.0
        %420 = vmatpush1.msra.mxu0 0.0
        %421 = vmatprep.subr.mxu0 0.0
        %422 = vmatpush1.msra.mxu0 0.0
        %423 = vmatprep.subr.mxu0 0.0
        %424 = vmatpush1.msra.mxu0 0.0
        %425 = vmatprep.subr.mxu0 0.0
        %426 = vmatpush1.msra.mxu0 0.0
        %427 = vmatprep.subr.mxu0 0.0
        %428 = vmatpush1.msra.mxu0 0.0
        %429 = vmatprep.subr.mxu0 0.0
        %430 = vmatpush1.msra.mxu0 0.0
        %431 = vmatprep.subr.mxu0 0.0
        %432 = vmatpush1.msra.mxu0 0.0
        %433 = vmatprep.subr.mxu0 0.0
        %434 = vmatpush1.msra.mxu0 0.0
        %435 = vmatprep.subr.mxu0 0.0
        %436 = vmatpush1.msra.mxu0 0.0
        %437 = vmatprep.subr.mxu0 0.0
        %438 = vmatpush1.msra.mxu0 0.0
        %439 = vmatprep.subr.mxu0 0.0
        %440 = vmatpush1.msra.mxu0 0.0
        %441 = vmatprep.subr.mxu0 0.0
        %442 = vmatpush1.msra.mxu0 0.0
        %443 = vmatprep.subr.mxu0 0.0
        %444 = vmatpush1.msra.mxu0 0.0
        %445 = vmatprep.subr.mxu0 0.0
        %446 = vmatpush1.msra.mxu0 0.0
        %447 = vmatprep.subr.mxu0 0.0
        %448 = vmatpush1.msra.mxu0 0.0
        %449 = vmatprep.subr.mxu0 0.0
        %450 = vmatpush1.msra.mxu0 0.0
        %451 = vmatprep.subr.mxu0 0.0
        %452 = vmatpush1.msra.mxu0 0.0
        %453 = vmatprep.subr.mxu0 0.0
        %454 = vmatpush1.msra.mxu0 0.0
        %455 = vmatprep.subr.mxu0 0.0
        %456 = vmatpush1.msra.mxu0 0.0
        %457 = vmatprep.mubr.f32.mxu0 0.0
        %458 = vmatmul.mubr.f32.gmra.mrb[0].mxu0 %v373
        %v459 = vpop.f32.mrb[0].mxu0
        %v460 = vadd.f32 %v370, %v459
        %v461 = vpop.f32.mrb[0].mxu0
        %462 = vmatprep.mubr.f32.mxu0 0.0
        %463 = vmatmul.mubr.f32.gmra.mrb[0].mxu0 %v376
        %v464 = vpop.f32.mrb[0].mxu0
        %v465 = vadd.f32 %v370, %v464
        %v466 = vpop.f32.mrb[0].mxu0
        %467 = vmatprep.mubr.f32.mxu0 0.0
        %468 = vmatmul.mubr.f32.gmra.mrb[0].mxu0 %v379
        %v469 = vpop.f32.mrb[0].mxu0
        %v470 = vadd.f32 %v370, %v469
        %v471 = vpop.f32.mrb[0].mxu0
        %472 = vmatprep.mubr.f32.mxu0 0.0
        %473 = vmatmul.mubr.f32.gmra.mrb[0].mxu0 %v382
        %v474 = vpop.f32.mrb[0].mxu0
        %v475 = vadd.f32 %v370, %v474
        %v476 = vpop.f32.mrb[0].mxu0
        %477 = vmatprep.mubr.f32.mxu0 0.0
        %478 = vmatmul.mubr.f32.gmra.mrb[0].mxu0 %v385
        %v479 = vpop.f32.mrb[0].mxu0
        %v480 = vadd.f32 %v370, %v479
        %v481 = vpop.f32.mrb[0].mxu0
        %482 = vmatprep.mubr.f32.mxu0 0.0
        %483 = vmatmul.mubr.f32.gmra.mrb[0].mxu0 %v388
        %v484 = vpop.f32.mrb[0].mxu0
        %v485 = vadd.f32 %v370, %v484
        %v486 = vpop.f32.mrb[0].mxu0
        %487 = vmatprep.mubr.f32.mxu0 0.0
        %488 = vmatmul.mubr.f32.gmra.mrb[0].mxu0 %v391
        %v489 = vpop.f32.mrb[0].mxu0
        %v490 = vadd.f32 %v370, %v489
        %v491 = vpop.f32.mrb[0].mxu0
        %492 = vdwg.mxu0
        %v493 = vmax.f32 %v460, 0.0
        %v494 = vmax.f32 %v465, 0.0
        %v495 = vmax.f32 %v470, 0.0
        %v496 = vmax.f32 %v475, 0.0
        %v497 = vmax.f32 %v480, 0.0
        %v498 = vmax.f32 %v485, 0.0
        %v499 = vmax.f32 %v490, 0.0
        %v500 = vld [vmem:[%s2] sm:$0xff]
        %v501 = vld [vmem:[%s2 + $0x8] sm:$0xff]
        %v502 = vld [vmem:[%s2 + $0x10] sm:$0xff]
        %v503 = vlaneseq
        %v504 = vshrl.u32 %v503, 7
        %v505 = vsub.s32 1, %v504
        %v506 = vrot.slane %v361, %v505
        %vm507 = vcmask 195584
        %v509 = vsel %vm507, %v493, 0
        %v512 = vsel %vm507, %v494, 0
        %v515 = vsel %vm507, %v495, 0
        %v518 = vsel %vm507, %v496, 0
        %v521 = vsel %vm507, %v497, 0
        %v524 = vsel %vm507, %v498, 0
        %v527 = vsel %vm507, %v499, 0
        %529 = vmatprep.subr.mxu0 0.0
        %530 = vmatpush1.msra.mxu0 %v500
        %531 = vmatprep.subr.mxu0 0.0
        %532 = vmatpush1.msra.mxu0 %v501
        %533 = vmatprep.subr.mxu0 0.0
        %534 = vmatpush1.msra.mxu0 %v502
        %535 = vmatprep.subr.mxu0 0.0
        %536 = vmatpush1.msra.mxu0 0.0
        %537 = vmatprep.subr.mxu0 0.0
        %538 = vmatpush1.msra.mxu0 0.0
        %539 = vmatprep.subr.mxu0 0.0
        %540 = vmatpush1.msra.mxu0 0.0
        %541 = vmatprep.subr.mxu0 0.0
        %542 = vmatpush1.msra.mxu0 0.0
        %543 = vmatprep.subr.mxu0 0.0
        %544 = vmatpush1.msra.mxu0 0.0
        %545 = vmatprep.subr.mxu0 0.0
        %546 = vmatpush1.msra.mxu0 0.0
        %547 = vmatprep.subr.mxu0 0.0
        %548 = vmatpush1.msra.mxu0 0.0
        %549 = vmatprep.subr.mxu0 0.0
        %550 = vmatpush1.msra.mxu0 0.0
        %551 = vmatprep.subr.mxu0 0.0
        %552 = vmatpush1.msra.mxu0 0.0
        %553 = vmatprep.subr.mxu0 0.0
        %554 = vmatpush1.msra.mxu0 0.0
        %555 = vmatprep.subr.mxu0 0.0
        %556 = vmatpush1.msra.mxu0 0.0
        %557 = vmatprep.subr.mxu0 0.0
        %558 = vmatpush1.msra.mxu0 0.0
        %559 = vmatprep.subr.mxu0 0.0
        %560 = vmatpush1.msra.mxu0 0.0
        %561 = vmatprep.subr.mxu0 0.0
        %562 = vmatpush1.msra.mxu0 0.0
        %563 = vmatprep.subr.mxu0 0.0
        %564 = vmatpush1.msra.mxu0 0.0
        %565 = vmatprep.subr.mxu0 0.0
        %566 = vmatpush1.msra.mxu0 0.0
        %567 = vmatprep.subr.mxu0 0.0
        %568 = vmatpush1.msra.mxu0 0.0
        %569 = vmatprep.subr.mxu0 0.0
        %570 = vmatpush1.msra.mxu0 0.0
        %571 = vmatprep.subr.mxu0 0.0
        %572 = vmatpush1.msra.mxu0 0.0
        %573 = vmatprep.subr.mxu0 0.0
        %574 = vmatpush1.msra.mxu0 0.0
        %575 = vmatprep.subr.mxu0 0.0
        %576 = vmatpush1.msra.mxu0 0.0
        %577 = vmatprep.subr.mxu0 0.0
        %578 = vmatpush1.msra.mxu0 0.0
        %579 = vmatprep.subr.mxu0 0.0
        %580 = vmatpush1.msra.mxu0 0.0
        %581 = vmatprep.subr.mxu0 0.0
        %582 = vmatpush1.msra.mxu0 0.0
        %583 = vmatprep.subr.mxu0 0.0
        %584 = vmatpush1.msra.mxu0 0.0
        %585 = vmatprep.subr.mxu0 0.0
        %586 = vmatpush1.msra.mxu0 0.0
        %587 = vmatprep.subr.mxu0 0.0
        %588 = vmatpush1.msra.mxu0 0.0
        %589 = vmatprep.subr.mxu0 0.0
        %590 = vmatpush1.msra.mxu0 0.0
        %591 = vmatprep.subr.mxu0 0.0
        %592 = vmatpush1.msra.mxu0 0.0
        %593 = vmatprep.mubr.f32.mxu0 0.0
        %594 = vmatmul.mubr.f32.gmra.mrb[0].mxu0 %v509
        %v595 = vpop.f32.mrb[0].mxu0
        %v596 = vadd.f32 %v506, %v595
        %v597 = vpop.f32.mrb[0].mxu0
        %598 = vmatprep.mubr.f32.mxu0 0.0
        %599 = vmatmul.mubr.f32.gmra.mrb[0].mxu0 %v512
        %v600 = vpop.f32.mrb[0].mxu0
        %v601 = vadd.f32 %v506, %v600
        %v602 = vpop.f32.mrb[0].mxu0
        %603 = vmatprep.mubr.f32.mxu0 0.0
        %604 = vmatmul.mubr.f32.gmra.mrb[0].mxu0 %v515
        %v605 = vpop.f32.mrb[0].mxu0
        %v606 = vadd.f32 %v506, %v605
        %v607 = vpop.f32.mrb[0].mxu0
        %608 = vmatprep.mubr.f32.mxu0 0.0
        %609 = vmatmul.mubr.f32.gmra.mrb[0].mxu0 %v518
        %v610 = vpop.f32.mrb[0].mxu0
        %v611 = vadd.f32 %v506, %v610
        %v612 = vpop.f32.mrb[0].mxu0
        %613 = vmatprep.mubr.f32.mxu0 0.0
        %614 = vmatmul.mubr.f32.gmra.mrb[0].mxu0 %v521
        %v615 = vpop.f32.mrb[0].mxu0
        %v616 = vadd.f32 %v506, %v615
        %v617 = vpop.f32.mrb[0].mxu0
        %618 = vmatprep.mubr.f32.mxu0 0.0
        %619 = vmatmul.mubr.f32.gmra.mrb[0].mxu0 %v524
        %v620 = vpop.f32.mrb[0].mxu0
        %v621 = vadd.f32 %v506, %v620
        %v622 = vpop.f32.mrb[0].mxu0
        %623 = vmatprep.mubr.f32.mxu0 0.0
        %624 = vmatmul.mubr.f32.gmra.mrb[0].mxu0 %v527
        %v625 = vpop.f32.mrb[0].mxu0
        %v626 = vadd.f32 %v506, %v625
        %v627 = vpop.f32.mrb[0].mxu0
        %628 = vdwg.mxu0
        %v629 = vld [vmem:[%s4] sm:$0xff]
        %v630 = vld [vmem:[%s4 + $0x8] sm:$0xff]
        %v631 = vld [vmem:[%s4 + $0x10] sm:$0xff]
        %v632 = vld [vmem:[%s4 + $0x18] sm:$0xff]
        %v633 = vlaneseq
        %v634 = vshrl.u32 %v633, 7
        %v635 = vsub.s32 2, %v634
        %v636 = vrot.slane %v361, %v635
        %v637 = vsub.f32 %v636, %v596
        %v638 = vsub.f32 %v636, %v601
        %v639 = vsub.f32 %v636, %v606
        %v640 = vsub.f32 %v636, %v611
        %v641 = vsub.f32 %v636, %v616
        %v642 = vsub.f32 %v636, %v621
        %v643 = vsub.f32 %v636, %v626
        %v644 = vand.u32 2147483647, %v637
        %v645 = vand.u32 2147483647, %v638
        %v646 = vand.u32 2147483647, %v639
        %v647 = vand.u32 2147483647, %v640
        %v648 = vand.u32 2147483647, %v641
        %v649 = vand.u32 2147483647, %v642
        %v650 = vand.u32 2147483647, %v643
        %v651 = vsub.f32 %v596, %v644
        %v652 = vsub.f32 %v601, %v645
        %v653 = vsub.f32 %v606, %v646
        %v654 = vsub.f32 %v611, %v647
        %v655 = vsub.f32 %v616, %v648
        %v656 = vsub.f32 %v621, %v649
        %v657 = vsub.f32 %v626, %v650
        %v658 = vmax.f32 %v651, 0.0
        %v659 = vmax.f32 %v652, 0.0
        %v660 = vmax.f32 %v653, 0.0
        %v661 = vmax.f32 %v654, 0.0
        %v662 = vmax.f32 %v655, 0.0
        %v663 = vmax.f32 %v656, 0.0
        %v664 = vmax.f32 %v657, 0.0
        %v665 = vld [vmem:[%s5] sm:$0xff]
        %v666 = vld [vmem:[%s5 + $0x8] sm:$0xff]
        %v667 = vld [vmem:[%s5 + $0x10] sm:$0xff]
        %v669 = vsel %vm507, %v658, 0
        %v672 = vsel %vm507, %v659, 0
        %v675 = vsel %vm507, %v660, 0
        %v678 = vsel %vm507, %v661, 0
        %v681 = vsel %vm507, %v662, 0
        %v684 = vsel %vm507, %v663, 0
        %v687 = vsel %vm507, %v664, 0
        %689 = vmatprep.subr.mxu0 0.0
        %690 = vmatpush1.msra.mxu0 %v665
        %691 = vmatprep.subr.mxu0 0.0
        %692 = vmatpush1.msra.mxu0 %v666
        %693 = vmatprep.subr.mxu0 0.0
        %694 = vmatpush1.msra.mxu0 %v667
        %695 = vmatprep.subr.mxu0 0.0
        %696 = vmatpush1.msra.mxu0 0.0
        %697 = vmatprep.subr.mxu0 0.0
        %698 = vmatpush1.msra.mxu0 0.0
        %699 = vmatprep.subr.mxu0 0.0
        %700 = vmatpush1.msra.mxu0 0.0
        %701 = vmatprep.subr.mxu0 0.0
        %702 = vmatpush1.msra.mxu0 0.0
        %703 = vmatprep.subr.mxu0 0.0
        %704 = vmatpush1.msra.mxu0 0.0
        %705 = vmatprep.subr.mxu0 0.0
        %706 = vmatpush1.msra.mxu0 0.0
        %707 = vmatprep.subr.mxu0 0.0
        %708 = vmatpush1.msra.mxu0 0.0
        %709 = vmatprep.subr.mxu0 0.0
        %710 = vmatpush1.msra.mxu0 0.0
        %711 = vmatprep.subr.mxu0 0.0
        %712 = vmatpush1.msra.mxu0 0.0
        %713 = vmatprep.subr.mxu0 0.0
        %714 = vmatpush1.msra.mxu0 0.0
        %715 = vmatprep.subr.mxu0 0.0
        %716 = vmatpush1.msra.mxu0 0.0
        %717 = vmatprep.subr.mxu0 0.0
        %718 = vmatpush1.msra.mxu0 0.0
        %719 = vmatprep.subr.mxu0 0.0
        %720 = vmatpush1.msra.mxu0 0.0
        %721 = vmatprep.subr.mxu0 0.0
        %722 = vmatpush1.msra.mxu0 0.0
        %723 = vmatprep.subr.mxu0 0.0
        %724 = vmatpush1.msra.mxu0 0.0
        %725 = vmatprep.subr.mxu0 0.0
        %726 = vmatpush1.msra.mxu0 0.0
        %727 = vmatprep.subr.mxu0 0.0
        %728 = vmatpush1.msra.mxu0 0.0
        %729 = vmatprep.subr.mxu0 0.0
        %730 = vmatpush1.msra.mxu0 0.0
        %731 = vmatprep.subr.mxu0 0.0
        %732 = vmatpush1.msra.mxu0 0.0
        %733 = vmatprep.subr.mxu0 0.0
        %734 = vmatpush1.msra.mxu0 0.0
        %735 = vmatprep.subr.mxu0 0.0
        %736 = vmatpush1.msra.mxu0 0.0
        %737 = vmatprep.subr.mxu0 0.0
        %738 = vmatpush1.msra.mxu0 0.0
        %739 = vmatprep.subr.mxu0 0.0
        %740 = vmatpush1.msra.mxu0 0.0
        %741 = vmatprep.subr.mxu0 0.0
        %742 = vmatpush1.msra.mxu0 0.0
        %743 = vmatprep.subr.mxu0 0.0
        %744 = vmatpush1.msra.mxu0 0.0
        %745 = vmatprep.subr.mxu0 0.0
        %746 = vmatpush1.msra.mxu0 0.0
        %747 = vmatprep.subr.mxu0 0.0
        %748 = vmatpush1.msra.mxu0 0.0
        %749 = vmatprep.subr.mxu0 0.0
        %750 = vmatpush1.msra.mxu0 0.0
        %751 = vmatprep.subr.mxu0 0.0
        %752 = vmatpush1.msra.mxu0 0.0
        %753 = vmatprep.mubr.f32.mxu0 0.0
        %754 = vmatmul.mubr.f32.gmra.mrb[0].mxu0 %v669
        %v755 = vpop.f32.mrb[0].mxu0
        %v756 = vadd.f32 0.0, %v755
        %v757 = vpop.f32.mrb[0].mxu0
        %758 = vmatprep.mubr.f32.mxu0 0.0
        %759 = vmatmul.mubr.f32.gmra.mrb[0].mxu0 %v672
        %v760 = vpop.f32.mrb[0].mxu0
        %v761 = vadd.f32 0.0, %v760
        %v762 = vpop.f32.mrb[0].mxu0
        %763 = vmatprep.mubr.f32.mxu0 0.0
        %764 = vmatmul.mubr.f32.gmra.mrb[0].mxu0 %v675
        %v765 = vpop.f32.mrb[0].mxu0
        %v766 = vadd.f32 0.0, %v765
        %v767 = vpop.f32.mrb[0].mxu0
        %768 = vmatprep.mubr.f32.mxu0 0.0
        %769 = vmatmul.mubr.f32.gmra.mrb[0].mxu0 %v678
        %v770 = vpop.f32.mrb[0].mxu0
        %v771 = vadd.f32 0.0, %v770
        %v772 = vpop.f32.mrb[0].mxu0
        %773 = vmatprep.mubr.f32.mxu0 0.0
        %774 = vmatmul.mubr.f32.gmra.mrb[0].mxu0 %v681
        %v775 = vpop.f32.mrb[0].mxu0
        %v776 = vadd.f32 0.0, %v775
        %v777 = vpop.f32.mrb[0].mxu0
        %778 = vmatprep.mubr.f32.mxu0 0.0
        %779 = vmatmul.mubr.f32.gmra.mrb[0].mxu0 %v684
        %v780 = vpop.f32.mrb[0].mxu0
        %v781 = vadd.f32 0.0, %v780
        %v782 = vpop.f32.mrb[0].mxu0
        %783 = vmatprep.mubr.f32.mxu0 0.0
        %784 = vmatmul.mubr.f32.gmra.mrb[0].mxu0 %v687
        %v785 = vpop.f32.mrb[0].mxu0
        %v786 = vadd.f32 0.0, %v785
        %v787 = vpop.f32.mrb[0].mxu0
        %788 = vdwg.mxu0
        %789 = vmatprep.subr.mxu0 0.0
        %790 = vmatpush1.msra.mxu0 %v629
        %791 = vmatprep.subr.mxu0 0.0
        %792 = vmatpush1.msra.mxu0 %v630
        %793 = vmatprep.subr.mxu0 0.0
        %794 = vmatpush1.msra.mxu0 %v631
        %795 = vmatprep.subr.mxu0 0.0
        %796 = vmatpush1.msra.mxu0 %v632
        %797 = vmatprep.subr.mxu0 0.0
        %798 = vmatpush1.msra.mxu0 0.0
        %799 = vmatprep.subr.mxu0 0.0
        %800 = vmatpush1.msra.mxu0 0.0
        %801 = vmatprep.subr.mxu0 0.0
        %802 = vmatpush1.msra.mxu0 0.0
        %803 = vmatprep.subr.mxu0 0.0
        %804 = vmatpush1.msra.mxu0 0.0
        %805 = vmatprep.subr.mxu0 0.0
        %806 = vmatpush1.msra.mxu0 0.0
        %807 = vmatprep.subr.mxu0 0.0
        %808 = vmatpush1.msra.mxu0 0.0
        %809 = vmatprep.subr.mxu0 0.0
        %810 = vmatpush1.msra.mxu0 0.0
        %811 = vmatprep.subr.mxu0 0.0
        %812 = vmatpush1.msra.mxu0 0.0
        %813 = vmatprep.subr.mxu0 0.0
        %814 = vmatpush1.msra.mxu0 0.0
        %815 = vmatprep.subr.mxu0 0.0
        %816 = vmatpush1.msra.mxu0 0.0
        %817 = vmatprep.subr.mxu0 0.0
        %818 = vmatpush1.msra.mxu0 0.0
        %819 = vmatprep.subr.mxu0 0.0
        %820 = vmatpush1.msra.mxu0 0.0
        %821 = vmatprep.subr.mxu0 0.0
        %822 = vmatpush1.msra.mxu0 0.0
        %823 = vmatprep.subr.mxu0 0.0
        %824 = vmatpush1.msra.mxu0 0.0
        %825 = vmatprep.subr.mxu0 0.0
        %826 = vmatpush1.msra.mxu0 0.0
        %827 = vmatprep.subr.mxu0 0.0
        %828 = vmatpush1.msra.mxu0 0.0
        %829 = vmatprep.subr.mxu0 0.0
        %830 = vmatpush1.msra.mxu0 0.0
        %831 = vmatprep.subr.mxu0 0.0
        %832 = vmatpush1.msra.mxu0 0.0
        %833 = vmatprep.subr.mxu0 0.0
        %834 = vmatpush1.msra.mxu0 0.0
        %835 = vmatprep.subr.mxu0 0.0
        %836 = vmatpush1.msra.mxu0 0.0
        %837 = vmatprep.subr.mxu0 0.0
        %838 = vmatpush1.msra.mxu0 0.0
        %839 = vmatprep.subr.mxu0 0.0
        %840 = vmatpush1.msra.mxu0 0.0
        %841 = vmatprep.subr.mxu0 0.0
        %842 = vmatpush1.msra.mxu0 0.0
        %843 = vmatprep.subr.mxu0 0.0
        %844 = vmatpush1.msra.mxu0 0.0
        %845 = vmatprep.subr.mxu0 0.0
        %846 = vmatpush1.msra.mxu0 0.0
        %847 = vmatprep.subr.mxu0 0.0
        %848 = vmatpush1.msra.mxu0 0.0
        %849 = vmatprep.subr.mxu0 0.0
        %850 = vmatpush1.msra.mxu0 0.0
        %851 = vmatprep.subr.mxu0 0.0
        %852 = vmatpush1.msra.mxu0 0.0
        %853 = vmatprep.mubr.f32.mxu0 0.0
        %854 = vmatmul.mubr.f32.gmra.mrb[0].mxu0 %v373
        %v855 = vpop.f32.mrb[0].mxu0
        %v856 = vadd.f32 %v756, %v855
        %v857 = vpop.f32.mrb[0].mxu0
        %858 = vmatprep.mubr.f32.mxu0 0.0
        %859 = vmatmul.mubr.f32.gmra.mrb[0].mxu0 %v376
        %v860 = vpop.f32.mrb[0].mxu0
        %v861 = vadd.f32 %v761, %v860
        %v862 = vpop.f32.mrb[0].mxu0
        %863 = vmatprep.mubr.f32.mxu0 0.0
        %864 = vmatmul.mubr.f32.gmra.mrb[0].mxu0 %v379
        %v865 = vpop.f32.mrb[0].mxu0
        %v866 = vadd.f32 %v766, %v865
        %v867 = vpop.f32.mrb[0].mxu0
        %868 = vmatprep.mubr.f32.mxu0 0.0
        %869 = vmatmul.mubr.f32.gmra.mrb[0].mxu0 %v382
        %v870 = vpop.f32.mrb[0].mxu0
        %v871 = vadd.f32 %v771, %v870
        %v872 = vpop.f32.mrb[0].mxu0
        %873 = vmatprep.mubr.f32.mxu0 0.0
        %874 = vmatmul.mubr.f32.gmra.mrb[0].mxu0 %v385
        %v875 = vpop.f32.mrb[0].mxu0
        %v876 = vadd.f32 %v776, %v875
        %v877 = vpop.f32.mrb[0].mxu0
        %878 = vmatprep.mubr.f32.mxu0 0.0
        %879 = vmatmul.mubr.f32.gmra.mrb[0].mxu0 %v388
        %v880 = vpop.f32.mrb[0].mxu0
        %v881 = vadd.f32 %v781, %v880
        %v882 = vpop.f32.mrb[0].mxu0
        %883 = vmatprep.mubr.f32.mxu0 0.0
        %884 = vmatmul.mubr.f32.gmra.mrb[0].mxu0 %v391
        %v885 = vpop.f32.mrb[0].mxu0
        %v886 = vadd.f32 %v786, %v885
        %v887 = vpop.f32.mrb[0].mxu0
        %888 = vdwg.mxu0
        %v889 = vlaneseq
        %v890 = vshrl.u32 %v889, 7
        %v891 = vsub.s32 3, %v890
        %v892 = vrot.slane %v361, %v891
        %v893 = vsub.f32 %v596, %v892
        %v894 = vsub.f32 %v601, %v892
        %v895 = vsub.f32 %v606, %v892
        %v896 = vsub.f32 %v611, %v892
        %v897 = vsub.f32 %v616, %v892
        %v898 = vsub.f32 %v621, %v892
        %v899 = vsub.f32 %v626, %v892
        %v900 = vmul.f32 %v893, %v893
        %v901 = vmul.f32 %v894, %v894
        %v902 = vmul.f32 %v895, %v895
        %v903 = vmul.f32 %v896, %v896
        %v904 = vmul.f32 %v897, %v897
        %v905 = vmul.f32 %v898, %v898
        %v906 = vmul.f32 %v899, %v899
        %v907 = vlaneseq
        %v908 = vshrl.u32 %v907, 7
        %v909 = vsub.s32 4, %v908
        %v910 = vrot.slane %v361, %v909
        %v911 = vsub.f32 %v596, %v910
        %v912 = vsub.f32 %v601, %v910
        %v913 = vsub.f32 %v606, %v910
        %v914 = vsub.f32 %v611, %v910
        %v915 = vsub.f32 %v616, %v910
        %v916 = vsub.f32 %v621, %v910
        %v917 = vsub.f32 %v626, %v910
        %v918 = vmul.f32 %v911, %v911
        %v919 = vmul.f32 %v912, %v912
        %v920 = vmul.f32 %v913, %v913
        %v921 = vmul.f32 %v914, %v914
        %v922 = vmul.f32 %v915, %v915
        %v923 = vmul.f32 %v916, %v916
        %v924 = vmul.f32 %v917, %v917
        %v925 = vadd.f32 %v900, %v918
        %v926 = vadd.f32 %v901, %v919
        %v927 = vadd.f32 %v902, %v920
        %v928 = vadd.f32 %v903, %v921
        %v929 = vadd.f32 %v904, %v922
        %v930 = vadd.f32 %v905, %v923
        %v931 = vadd.f32 %v906, %v924
        %v932 = vsub.f32 0.0, %v925
        %v933 = vsub.f32 0.0, %v926
        %v934 = vsub.f32 0.0, %v927
        %v935 = vsub.f32 0.0, %v928
        %v936 = vsub.f32 0.0, %v929
        %v937 = vsub.f32 0.0, %v930
        %v938 = vsub.f32 0.0, %v931
        %v939 = vmul.f32 %v932, 50.0
        %v940 = vmul.f32 %v933, 50.0
        %v941 = vmul.f32 %v934, 50.0
        %v942 = vmul.f32 %v935, 50.0
        %v943 = vmul.f32 %v936, 50.0
        %v944 = vmul.f32 %v937, 50.0
        %v945 = vmul.f32 %v938, 50.0
        %v946 = vmul.f32 %v939, 1.442695
        %v947 = vpow.pop %v946
        %v948 = vmul.f32 %v940, 1.442695
        %v949 = vpow.pop %v948
        %v950 = vmul.f32 %v941, 1.442695
        %v951 = vpow.pop %v950
        %v952 = vmul.f32 %v942, 1.442695
        %v953 = vpow.pop %v952
        %v954 = vmul.f32 %v943, 1.442695
        %v955 = vpow.pop %v954
        %v956 = vmul.f32 %v944, 1.442695
        %v957 = vpow.pop %v956
        %v958 = vmul.f32 %v945, 1.442695
        %v959 = vpow.pop %v958
        %v960 = vld [vmem:[%s6] sm:$0xff]
        %v961 = vld [vmem:[%s6 + $0x8] sm:$0xff]
        %v962 = vld [vmem:[%s6 + $0x10] sm:$0xff]
        %v964 = vsel %vm507, %v947, 0
        %v967 = vsel %vm507, %v949, 0
        %v970 = vsel %vm507, %v951, 0
        %v973 = vsel %vm507, %v953, 0
        %v976 = vsel %vm507, %v955, 0
        %v979 = vsel %vm507, %v957, 0
        %v982 = vsel %vm507, %v959, 0
        %984 = vmatprep.subr.mxu0 0.0
        %985 = vmatpush1.msra.mxu0 %v960
        %986 = vmatprep.subr.mxu0 0.0
        %987 = vmatpush1.msra.mxu0 %v961
        %988 = vmatprep.subr.mxu0 0.0
        %989 = vmatpush1.msra.mxu0 %v962
        %990 = vmatprep.subr.mxu0 0.0
        %991 = vmatpush1.msra.mxu0 0.0
        %992 = vmatprep.subr.mxu0 0.0
        %993 = vmatpush1.msra.mxu0 0.0
        %994 = vmatprep.subr.mxu0 0.0
        %995 = vmatpush1.msra.mxu0 0.0
        %996 = vmatprep.subr.mxu0 0.0
        %997 = vmatpush1.msra.mxu0 0.0
        %998 = vmatprep.subr.mxu0 0.0
        %999 = vmatpush1.msra.mxu0 0.0
        %1000 = vmatprep.subr.mxu0 0.0
        %1001 = vmatpush1.msra.mxu0 0.0
        %1002 = vmatprep.subr.mxu0 0.0
        %1003 = vmatpush1.msra.mxu0 0.0
        %1004 = vmatprep.subr.mxu0 0.0
        %1005 = vmatpush1.msra.mxu0 0.0
        %1006 = vmatprep.subr.mxu0 0.0
        %1007 = vmatpush1.msra.mxu0 0.0
        %1008 = vmatprep.subr.mxu0 0.0
        %1009 = vmatpush1.msra.mxu0 0.0
        %1010 = vmatprep.subr.mxu0 0.0
        %1011 = vmatpush1.msra.mxu0 0.0
        %1012 = vmatprep.subr.mxu0 0.0
        %1013 = vmatpush1.msra.mxu0 0.0
        %1014 = vmatprep.subr.mxu0 0.0
        %1015 = vmatpush1.msra.mxu0 0.0
        %1016 = vmatprep.subr.mxu0 0.0
        %1017 = vmatpush1.msra.mxu0 0.0
        %1018 = vmatprep.subr.mxu0 0.0
        %1019 = vmatpush1.msra.mxu0 0.0
        %1020 = vmatprep.subr.mxu0 0.0
        %1021 = vmatpush1.msra.mxu0 0.0
        %1022 = vmatprep.subr.mxu0 0.0
        %1023 = vmatpush1.msra.mxu0 0.0
        %1024 = vmatprep.subr.mxu0 0.0
        %1025 = vmatpush1.msra.mxu0 0.0
        %1026 = vmatprep.subr.mxu0 0.0
        %1027 = vmatpush1.msra.mxu0 0.0
        %1028 = vmatprep.subr.mxu0 0.0
        %1029 = vmatpush1.msra.mxu0 0.0
        %1030 = vmatprep.subr.mxu0 0.0
        %1031 = vmatpush1.msra.mxu0 0.0
        %1032 = vmatprep.subr.mxu0 0.0
        %1033 = vmatpush1.msra.mxu0 0.0
        %1034 = vmatprep.subr.mxu0 0.0
        %1035 = vmatpush1.msra.mxu0 0.0
        %1036 = vmatprep.subr.mxu0 0.0
        %1037 = vmatpush1.msra.mxu0 0.0
        %1038 = vmatprep.subr.mxu0 0.0
        %1039 = vmatpush1.msra.mxu0 0.0
        %1040 = vmatprep.subr.mxu0 0.0
        %1041 = vmatpush1.msra.mxu0 0.0
        %1042 = vmatprep.subr.mxu0 0.0
        %1043 = vmatpush1.msra.mxu0 0.0
        %1044 = vmatprep.subr.mxu0 0.0
        %1045 = vmatpush1.msra.mxu0 0.0
        %1046 = vmatprep.subr.mxu0 0.0
        %1047 = vmatpush1.msra.mxu0 0.0
        %1048 = vmatprep.mubr.f32.mxu0 0.0
        %1049 = vmatmul.mubr.f32.gmra.mrb[0].mxu0 %v964
        %v1050 = vpop.f32.mrb[0].mxu0
        %v1051 = vadd.f32 0.0, %v1050
        %v1052 = vpop.f32.mrb[0].mxu0
        %1053 = vmatprep.mubr.f32.mxu0 0.0
        %1054 = vmatmul.mubr.f32.gmra.mrb[0].mxu0 %v967
        %v1055 = vpop.f32.mrb[0].mxu0
        %v1056 = vadd.f32 0.0, %v1055
        %v1057 = vpop.f32.mrb[0].mxu0
        %1058 = vmatprep.mubr.f32.mxu0 0.0
        %1059 = vmatmul.mubr.f32.gmra.mrb[0].mxu0 %v970
        %v1060 = vpop.f32.mrb[0].mxu0
        %v1061 = vadd.f32 0.0, %v1060
        %v1062 = vpop.f32.mrb[0].mxu0
        %1063 = vmatprep.mubr.f32.mxu0 0.0
        %1064 = vmatmul.mubr.f32.gmra.mrb[0].mxu0 %v973
        %v1065 = vpop.f32.mrb[0].mxu0
        %v1066 = vadd.f32 0.0, %v1065
        %v1067 = vpop.f32.mrb[0].mxu0
        %1068 = vmatprep.mubr.f32.mxu0 0.0
        %1069 = vmatmul.mubr.f32.gmra.mrb[0].mxu0 %v976
        %v1070 = vpop.f32.mrb[0].mxu0
        %v1071 = vadd.f32 0.0, %v1070
        %v1072 = vpop.f32.mrb[0].mxu0
        %1073 = vmatprep.mubr.f32.mxu0 0.0
        %1074 = vmatmul.mubr.f32.gmra.mrb[0].mxu0 %v979
        %v1075 = vpop.f32.mrb[0].mxu0
        %v1076 = vadd.f32 0.0, %v1075
        %v1077 = vpop.f32.mrb[0].mxu0
        %1078 = vmatprep.mubr.f32.mxu0 0.0
        %1079 = vmatmul.mubr.f32.gmra.mrb[0].mxu0 %v982
        %v1080 = vpop.f32.mrb[0].mxu0
        %v1081 = vadd.f32 0.0, %v1080
        %v1082 = vpop.f32.mrb[0].mxu0
        %1083 = vdwg.mxu0
        %v1084 = vadd.f32 %v856, %v1051
        %v1085 = vadd.f32 %v861, %v1056
        %v1086 = vadd.f32 %v866, %v1061
        %v1087 = vadd.f32 %v871, %v1066
        %v1088 = vadd.f32 %v876, %v1071
        %v1089 = vadd.f32 %v881, %v1076
        %v1090 = vadd.f32 %v886, %v1081
        %v1091 = vlaneseq
        %v1092 = vshrl.u32 %v1091, 7
        %v1093 = vsub.s32 5, %v1092
        %v1094 = vrot.slane %v361, %v1093
        %v1095 = vmul.f32 %v596, %v1094
        %v1096 = vmul.f32 %v601, %v1094
        %v1097 = vmul.f32 %v606, %v1094
        %v1098 = vmul.f32 %v611, %v1094
        %v1099 = vmul.f32 %v616, %v1094
        %v1100 = vmul.f32 %v621, %v1094
        %v1101 = vmul.f32 %v626, %v1094
        %v1102 = vlaneseq
        %v1103 = vshrl.u32 %v1102, 7
        %v1104 = vsub.s32 6, %v1103
        %v1105 = vrot.slane %v361, %v1104
        %v1106 = vadd.f32 %v1095, %v1105
        %v1107 = vadd.f32 %v1096, %v1105
        %v1108 = vadd.f32 %v1097, %v1105
        %v1109 = vadd.f32 %v1098, %v1105
        %v1110 = vadd.f32 %v1099, %v1105
        %v1111 = vadd.f32 %v1100, %v1105
        %v1112 = vadd.f32 %v1101, %v1105
        %v1113 = vld [vmem:[%s7] sm:$0xff]
        %v1114 = vld [vmem:[%s7 + $0x8] sm:$0xff]
        %v1115 = vld [vmem:[%s7 + $0x10] sm:$0xff]
        %v1117 = vsel %vm507, %v1106, 0
        %v1120 = vsel %vm507, %v1107, 0
        %v1123 = vsel %vm507, %v1108, 0
        %v1126 = vsel %vm507, %v1109, 0
        %v1129 = vsel %vm507, %v1110, 0
        %v1132 = vsel %vm507, %v1111, 0
        %v1135 = vsel %vm507, %v1112, 0
        %1137 = vmatprep.subr.mxu0 0.0
        %1138 = vmatpush1.msra.mxu0 %v1113
        %1139 = vmatprep.subr.mxu0 0.0
        %1140 = vmatpush1.msra.mxu0 %v1114
        %1141 = vmatprep.subr.mxu0 0.0
        %1142 = vmatpush1.msra.mxu0 %v1115
        %1143 = vmatprep.subr.mxu0 0.0
        %1144 = vmatpush1.msra.mxu0 0.0
        %1145 = vmatprep.subr.mxu0 0.0
        %1146 = vmatpush1.msra.mxu0 0.0
        %1147 = vmatprep.subr.mxu0 0.0
        %1148 = vmatpush1.msra.mxu0 0.0
        %1149 = vmatprep.subr.mxu0 0.0
        %1150 = vmatpush1.msra.mxu0 0.0
        %1151 = vmatprep.subr.mxu0 0.0
        %1152 = vmatpush1.msra.mxu0 0.0
        %1153 = vmatprep.subr.mxu0 0.0
        %1154 = vmatpush1.msra.mxu0 0.0
        %1155 = vmatprep.subr.mxu0 0.0
        %1156 = vmatpush1.msra.mxu0 0.0
        %1157 = vmatprep.subr.mxu0 0.0
        %1158 = vmatpush1.msra.mxu0 0.0
        %1159 = vmatprep.subr.mxu0 0.0
        %1160 = vmatpush1.msra.mxu0 0.0
        %1161 = vmatprep.subr.mxu0 0.0
        %1162 = vmatpush1.msra.mxu0 0.0
        %1163 = vmatprep.subr.mxu0 0.0
        %1164 = vmatpush1.msra.mxu0 0.0
        %1165 = vmatprep.subr.mxu0 0.0
        %1166 = vmatpush1.msra.mxu0 0.0
        %1167 = vmatprep.subr.mxu0 0.0
        %1168 = vmatpush1.msra.mxu0 0.0
        %1169 = vmatprep.subr.mxu0 0.0
        %1170 = vmatpush1.msra.mxu0 0.0
        %1171 = vmatprep.subr.mxu0 0.0
        %1172 = vmatpush1.msra.mxu0 0.0
        %1173 = vmatprep.subr.mxu0 0.0
        %1174 = vmatpush1.msra.mxu0 0.0
        %1175 = vmatprep.subr.mxu0 0.0
        %1176 = vmatpush1.msra.mxu0 0.0
        %1177 = vmatprep.subr.mxu0 0.0
        %1178 = vmatpush1.msra.mxu0 0.0
        %1179 = vmatprep.subr.mxu0 0.0
        %1180 = vmatpush1.msra.mxu0 0.0
        %1181 = vmatprep.subr.mxu0 0.0
        %1182 = vmatpush1.msra.mxu0 0.0
        %1183 = vmatprep.subr.mxu0 0.0
        %1184 = vmatpush1.msra.mxu0 0.0
        %1185 = vmatprep.subr.mxu0 0.0
        %1186 = vmatpush1.msra.mxu0 0.0
        %1187 = vmatprep.subr.mxu0 0.0
        %1188 = vmatpush1.msra.mxu0 0.0
        %1189 = vmatprep.subr.mxu0 0.0
        %1190 = vmatpush1.msra.mxu0 0.0
        %1191 = vmatprep.subr.mxu0 0.0
        %1192 = vmatpush1.msra.mxu0 0.0
        %1193 = vmatprep.subr.mxu0 0.0
        %1194 = vmatpush1.msra.mxu0 0.0
        %1195 = vmatprep.subr.mxu0 0.0
        %1196 = vmatpush1.msra.mxu0 0.0
        %1197 = vmatprep.subr.mxu0 0.0
        %1198 = vmatpush1.msra.mxu0 0.0
        %1199 = vmatprep.subr.mxu0 0.0
        %1200 = vmatpush1.msra.mxu0 0.0
        %1201 = vmatprep.mubr.f32.mxu0 0.0
        %1202 = vmatmul.mubr.f32.gmra.mrb[0].mxu0 %v1117
        %v1203 = vpop.f32.mrb[0].mxu0
        %v1204 = vadd.f32 0.0, %v1203
        %v1205 = vpop.f32.mrb[0].mxu0
        %1206 = vmatprep.mubr.f32.mxu0 0.0
        %1207 = vmatmul.mubr.f32.gmra.mrb[0].mxu0 %v1120
        %v1208 = vpop.f32.mrb[0].mxu0
        %v1209 = vadd.f32 0.0, %v1208
        %v1210 = vpop.f32.mrb[0].mxu0
        %1211 = vmatprep.mubr.f32.mxu0 0.0
        %1212 = vmatmul.mubr.f32.gmra.mrb[0].mxu0 %v1123
        %v1213 = vpop.f32.mrb[0].mxu0
        %v1214 = vadd.f32 0.0, %v1213
        %v1215 = vpop.f32.mrb[0].mxu0
        %1216 = vmatprep.mubr.f32.mxu0 0.0
        %1217 = vmatmul.mubr.f32.gmra.mrb[0].mxu0 %v1126
        %v1218 = vpop.f32.mrb[0].mxu0
        %v1219 = vadd.f32 0.0, %v1218
        %v1220 = vpop.f32.mrb[0].mxu0
        %1221 = vmatprep.mubr.f32.mxu0 0.0
        %1222 = vmatmul.mubr.f32.gmra.mrb[0].mxu0 %v1129
        %v1223 = vpop.f32.mrb[0].mxu0
        %v1224 = vadd.f32 0.0, %v1223
        %v1225 = vpop.f32.mrb[0].mxu0
        %1226 = vmatprep.mubr.f32.mxu0 0.0
        %1227 = vmatmul.mubr.f32.gmra.mrb[0].mxu0 %v1132
        %v1228 = vpop.f32.mrb[0].mxu0
        %v1229 = vadd.f32 0.0, %v1228
        %v1230 = vpop.f32.mrb[0].mxu0
        %1231 = vmatprep.mubr.f32.mxu0 0.0
        %1232 = vmatmul.mubr.f32.gmra.mrb[0].mxu0 %v1135
        %v1233 = vpop.f32.mrb[0].mxu0
        %v1234 = vadd.f32 0.0, %v1233
        %v1235 = vpop.f32.mrb[0].mxu0
        %1236 = vdwg.mxu0
        %v1237 = vadd.f32 %v1084, %v1204
        %v1238 = vadd.f32 %v1085, %v1209
        %v1239 = vadd.f32 %v1086, %v1214
        %v1240 = vadd.f32 %v1087, %v1219
        %v1241 = vadd.f32 %v1088, %v1224
        %v1242 = vadd.f32 %v1089, %v1229
        %v1243 = vadd.f32 %v1090, %v1234
        %v1244 = vlaneseq
        %v1245 = vshrl.u32 %v1244, 7
        %v1246 = vsub.s32 7, %v1245
        %v1247 = vrot.slane %v361, %v1246
        %v1248 = vsub.f32 %v596, %v1247
        %v1249 = vsub.f32 %v601, %v1247
        %v1250 = vsub.f32 %v606, %v1247
        %v1251 = vsub.f32 %v611, %v1247
        %v1252 = vsub.f32 %v616, %v1247
        %v1253 = vsub.f32 %v621, %v1247
        %v1254 = vsub.f32 %v626, %v1247
        %v1255 = vand.u32 2147483647, %v1248
        %v1256 = vand.u32 2147483647, %v1249
        %v1257 = vand.u32 2147483647, %v1250
        %v1258 = vand.u32 2147483647, %v1251
        %v1259 = vand.u32 2147483647, %v1252
        %v1260 = vand.u32 2147483647, %v1253
        %v1261 = vand.u32 2147483647, %v1254
        %v1262 = vmul.f32 %v1255, 2.0
        %v1263 = vmul.f32 %v1256, 2.0
        %v1264 = vmul.f32 %v1257, 2.0
        %v1265 = vmul.f32 %v1258, 2.0
        %v1266 = vmul.f32 %v1259, 2.0
        %v1267 = vmul.f32 %v1260, 2.0
        %v1268 = vmul.f32 %v1261, 2.0
        %v1269 = vadd.f32 %v1262, 1.0
        %v1270 = vadd.f32 %v1263, 1.0
        %v1271 = vadd.f32 %v1264, 1.0
        %v1272 = vadd.f32 %v1265, 1.0
        %v1273 = vadd.f32 %v1266, 1.0
        %v1274 = vadd.f32 %v1267, 1.0
        %v1275 = vadd.f32 %v1268, 1.0
        %v1276 = vrcp.pop %v1269
        %v1277 = vrcp.pop %v1270
        %v1278 = vrcp.pop %v1271
        %v1279 = vrcp.pop %v1272
        %v1280 = vrcp.pop %v1273
        %v1281 = vrcp.pop %v1274
        %v1282 = vrcp.pop %v1275
        %v1283 = vlaneseq
        %v1284 = vshrl.u32 %v1283, 7
        %v1285 = vsub.s32 0, %v1284
        %v1286 = vrot.slane %v362, %v1285
        %v1287 = vsub.f32 %v1286, %v1262
        %v1288 = vsub.f32 %v1286, %v1263
        %v1289 = vsub.f32 %v1286, %v1264
        %v1290 = vsub.f32 %v1286, %v1265
        %v1291 = vsub.f32 %v1286, %v1266
        %v1292 = vsub.f32 %v1286, %v1267
        %v1293 = vsub.f32 %v1286, %v1268
        %v1294 = vand.u32 2147483647, %v1287
        %v1295 = vand.u32 2147483647, %v1288
        %v1296 = vand.u32 2147483647, %v1289
        %v1297 = vand.u32 2147483647, %v1290
        %v1298 = vand.u32 2147483647, %v1291
        %v1299 = vand.u32 2147483647, %v1292
        %v1300 = vand.u32 2147483647, %v1293
        %v1301 = vadd.f32 %v1294, 1.0
        %v1302 = vadd.f32 %v1295, 1.0
        %v1303 = vadd.f32 %v1296, 1.0
        %v1304 = vadd.f32 %v1297, 1.0
        %v1305 = vadd.f32 %v1298, 1.0
        %v1306 = vadd.f32 %v1299, 1.0
        %v1307 = vadd.f32 %v1300, 1.0
        %v1308 = vrcp.pop %v1301
        %v1309 = vrcp.pop %v1302
        %v1310 = vrcp.pop %v1303
        %v1311 = vrcp.pop %v1304
        %v1312 = vrcp.pop %v1305
        %v1313 = vrcp.pop %v1306
        %v1314 = vrcp.pop %v1307
        %v1315 = vsub.f32 %v1276, %v1308
        %v1316 = vsub.f32 %v1277, %v1309
        %v1317 = vsub.f32 %v1278, %v1310
        %v1318 = vsub.f32 %v1279, %v1311
        %v1319 = vsub.f32 %v1280, %v1312
        %v1320 = vsub.f32 %v1281, %v1313
        %v1321 = vsub.f32 %v1282, %v1314
        %v1322 = vld [vmem:[%s8] sm:$0xff]
        %v1323 = vld [vmem:[%s8 + $0x8] sm:$0xff]
        %v1324 = vld [vmem:[%s8 + $0x10] sm:$0xff]
        %v1326 = vsel %vm507, %v1315, 0
        %v1329 = vsel %vm507, %v1316, 0
        %v1332 = vsel %vm507, %v1317, 0
        %v1335 = vsel %vm507, %v1318, 0
        %v1338 = vsel %vm507, %v1319, 0
        %v1341 = vsel %vm507, %v1320, 0
        %v1344 = vsel %vm507, %v1321, 0
        %1346 = vmatprep.subr.mxu0 0.0
        %1347 = vmatpush1.msra.mxu0 %v1322
        %1348 = vmatprep.subr.mxu0 0.0
        %1349 = vmatpush1.msra.mxu0 %v1323
        %1350 = vmatprep.subr.mxu0 0.0
        %1351 = vmatpush1.msra.mxu0 %v1324
        %1352 = vmatprep.subr.mxu0 0.0
        %1353 = vmatpush1.msra.mxu0 0.0
        %1354 = vmatprep.subr.mxu0 0.0
        %1355 = vmatpush1.msra.mxu0 0.0
        %1356 = vmatprep.subr.mxu0 0.0
        %1357 = vmatpush1.msra.mxu0 0.0
        %1358 = vmatprep.subr.mxu0 0.0
        %1359 = vmatpush1.msra.mxu0 0.0
        %1360 = vmatprep.subr.mxu0 0.0
        %1361 = vmatpush1.msra.mxu0 0.0
        %1362 = vmatprep.subr.mxu0 0.0
        %1363 = vmatpush1.msra.mxu0 0.0
        %1364 = vmatprep.subr.mxu0 0.0
        %1365 = vmatpush1.msra.mxu0 0.0
        %1366 = vmatprep.subr.mxu0 0.0
        %1367 = vmatpush1.msra.mxu0 0.0
        %1368 = vmatprep.subr.mxu0 0.0
        %1369 = vmatpush1.msra.mxu0 0.0
        %1370 = vmatprep.subr.mxu0 0.0
        %1371 = vmatpush1.msra.mxu0 0.0
        %1372 = vmatprep.subr.mxu0 0.0
        %1373 = vmatpush1.msra.mxu0 0.0
        %1374 = vmatprep.subr.mxu0 0.0
        %1375 = vmatpush1.msra.mxu0 0.0
        %1376 = vmatprep.subr.mxu0 0.0
        %1377 = vmatpush1.msra.mxu0 0.0
        %1378 = vmatprep.subr.mxu0 0.0
        %1379 = vmatpush1.msra.mxu0 0.0
        %1380 = vmatprep.subr.mxu0 0.0
        %1381 = vmatpush1.msra.mxu0 0.0
        %1382 = vmatprep.subr.mxu0 0.0
        %1383 = vmatpush1.msra.mxu0 0.0
        %1384 = vmatprep.subr.mxu0 0.0
        %1385 = vmatpush1.msra.mxu0 0.0
        %1386 = vmatprep.subr.mxu0 0.0
        %1387 = vmatpush1.msra.mxu0 0.0
        %1388 = vmatprep.subr.mxu0 0.0
        %1389 = vmatpush1.msra.mxu0 0.0
        %1390 = vmatprep.subr.mxu0 0.0
        %1391 = vmatpush1.msra.mxu0 0.0
        %1392 = vmatprep.subr.mxu0 0.0
        %1393 = vmatpush1.msra.mxu0 0.0
        %1394 = vmatprep.subr.mxu0 0.0
        %1395 = vmatpush1.msra.mxu0 0.0
        %1396 = vmatprep.subr.mxu0 0.0
        %1397 = vmatpush1.msra.mxu0 0.0
        %1398 = vmatprep.subr.mxu0 0.0
        %1399 = vmatpush1.msra.mxu0 0.0
        %1400 = vmatprep.subr.mxu0 0.0
        %1401 = vmatpush1.msra.mxu0 0.0
        %1402 = vmatprep.subr.mxu0 0.0
        %1403 = vmatpush1.msra.mxu0 0.0
        %1404 = vmatprep.subr.mxu0 0.0
        %1405 = vmatpush1.msra.mxu0 0.0
        %1406 = vmatprep.subr.mxu0 0.0
        %1407 = vmatpush1.msra.mxu0 0.0
        %1408 = vmatprep.subr.mxu0 0.0
        %1409 = vmatpush1.msra.mxu0 0.0
        %1410 = vmatprep.mubr.f32.mxu0 0.0
        %1411 = vmatmul.mubr.f32.gmra.mrb[0].mxu0 %v1326
        %v1412 = vpop.f32.mrb[0].mxu0
        %v1413 = vadd.f32 0.0, %v1412
        %v1414 = vpop.f32.mrb[0].mxu0
        %1415 = vmatprep.mubr.f32.mxu0 0.0
        %1416 = vmatmul.mubr.f32.gmra.mrb[0].mxu0 %v1329
        %v1417 = vpop.f32.mrb[0].mxu0
        %v1418 = vadd.f32 0.0, %v1417
        %v1419 = vpop.f32.mrb[0].mxu0
        %1420 = vmatprep.mubr.f32.mxu0 0.0
        %1421 = vmatmul.mubr.f32.gmra.mrb[0].mxu0 %v1332
        %v1422 = vpop.f32.mrb[0].mxu0
        %v1423 = vadd.f32 0.0, %v1422
        %v1424 = vpop.f32.mrb[0].mxu0
        %1425 = vmatprep.mubr.f32.mxu0 0.0
        %1426 = vmatmul.mubr.f32.gmra.mrb[0].mxu0 %v1335
        %v1427 = vpop.f32.mrb[0].mxu0
        %v1428 = vadd.f32 0.0, %v1427
        %v1429 = vpop.f32.mrb[0].mxu0
        %1430 = vmatprep.mubr.f32.mxu0 0.0
        %1431 = vmatmul.mubr.f32.gmra.mrb[0].mxu0 %v1338
        %v1432 = vpop.f32.mrb[0].mxu0
        %v1433 = vadd.f32 0.0, %v1432
        %v1434 = vpop.f32.mrb[0].mxu0
        %1435 = vmatprep.mubr.f32.mxu0 0.0
        %1436 = vmatmul.mubr.f32.gmra.mrb[0].mxu0 %v1341
        %v1437 = vpop.f32.mrb[0].mxu0
        %v1438 = vadd.f32 0.0, %v1437
        %v1439 = vpop.f32.mrb[0].mxu0
        %1440 = vmatprep.mubr.f32.mxu0 0.0
        %1441 = vmatmul.mubr.f32.gmra.mrb[0].mxu0 %v1344
        %v1442 = vpop.f32.mrb[0].mxu0
        %v1443 = vadd.f32 0.0, %v1442
        %v1444 = vpop.f32.mrb[0].mxu0
        %1445 = vdwg.mxu0
        %v1446 = vadd.f32 %v1237, %v1413
        %v1447 = vadd.f32 %v1238, %v1418
        %v1448 = vadd.f32 %v1239, %v1423
        %v1449 = vadd.f32 %v1240, %v1428
        %v1450 = vadd.f32 %v1241, %v1433
        %v1451 = vadd.f32 %v1242, %v1438
        %v1452 = vadd.f32 %v1243, %v1443
        %v1453 = vlaneseq
        %v1454 = vshrl.u32 %v1453, 7
        %v1455 = vsub.s32 1, %v1454
        %v1456 = vrot.slane %v362, %v1455
        %v1457 = vadd.f32 %v1446, %v1456
        %v1458 = vadd.f32 %v1447, %v1456
        %v1459 = vadd.f32 %v1448, %v1456
        %v1460 = vadd.f32 %v1449, %v1456
        %v1461 = vadd.f32 %v1450, %v1456
        %v1462 = vadd.f32 %v1451, %v1456
        %v1463 = vadd.f32 %v1452, %v1456
        %v1464 = vmax.f32 %v1457, 0.0
        %v1465 = vmax.f32 %v1458, 0.0
        %v1466 = vmax.f32 %v1459, 0.0
        %v1467 = vmax.f32 %v1460, 0.0
        %v1468 = vmax.f32 %v1461, 0.0
        %v1469 = vmax.f32 %v1462, 0.0
        %v1470 = vmax.f32 %v1463, 0.0
        %1471 = vst.msk [vmem:[%s334] sm:$0xff] %vm371, %v1464
        %1472 = vst.msk [vmem:[%s334 + $0x8] sm:$0xff] %vm371, %v1465
        %1473 = vst.msk [vmem:[%s334 + $0x10] sm:$0xff] %vm371, %v1466
        %1474 = vst.msk [vmem:[%s334 + $0x18] sm:$0xff] %vm371, %v1467
        %1475 = vst.msk [vmem:[%s334 + $0x20] sm:$0xff] %vm371, %v1468
        %1476 = vst.msk [vmem:[%s334 + $0x28] sm:$0xff] %vm371, %v1469
        %1477 = vst.msk [vmem:[%s334 + $0x30] sm:$0xff] %vm371, %v1470
        %s1478 = sand.u32 %s222, 1
        %s1479 = sand.u32 %s222, 1
        %s1480 = smul.addr %s1479, 56
        %s1481 = scalar_lea.vmem [#allocation2], %s1480
        // Predicated region
        $region57: #{tpu_custom_call.1} parent=55 // pred_check
          %p1482 = pneg %p232
        $region58: #{tpu_custom_call.1} parent=55 // pred_check_branch
          %1484 = sbr.rel (%p1482) target = $region60
        $region59: #{tpu_custom_call.1} parent=55 // pred_region
          %s1485 = smul.u32 7, %s20
          %s1486 = ssub.s32 13, %s1485
          %p1487 = scmp.lt.s32.totalorder %s1486, 7
          %s1488 = scalar_select %p1487, %s1486, 7
          %s1489 = smul.u32 128, %s1488
          %p1490 = scmp.ne.s32.totalorder 0, %s1489
          %s1491 = smul.addr %s1485, 8
          %s1492 = scalar_lea.vmem %s9, %s1491
          // Predicated region
          $region61: #{tpu_custom_call.1} parent=59 // pred_check
            %p1493 = pneg %p1490
          $region62: #{tpu_custom_call.1} parent=59 // pred_check_branch
            %1495 = sbr.rel (%p1493) target = $region64
          $region63: #{tpu_custom_call.1} parent=59 // pred_region
            // Predicated region
            $region65: #{tpu_custom_call.1} parent=63 // pred_check
              _
            $region66: #{tpu_custom_call.1} parent=63 // pred_check_branch
              %1497 = sbr.rel (0) target = $region68
            $region67: #{tpu_custom_call.1} parent=63 // pred_region
              // Predicated region
              $region87: #{tpu_custom_call.1} parent=67 // pred_check
                _
              $region88: #{tpu_custom_call.1} parent=67 // pred_check_branch
                %1559 = sbr.rel (0) target = $region90
              $region89: #{tpu_custom_call.1} parent=67 // pred_region
                %s1560 = sdiv.u32.pop %s1488, 7
                %s1561 = srem.u32.pop %s1488, 7
                // While loop
                $region91: #{tpu_custom_call.1} parent=89 // loop_pre_header
                  _
                $region92: #{tpu_custom_call.1} parent=89 // loop_header
                  %s1563 = sphi 0, %s1565
                  %p1564 = scmp.ge.s32.totalorder %s1563, %s1560
                  %s1568 = sphi 0, %s1587
                  %s1569 = sphi %s1481, %s1590
                  %s1570 = sphi %s1492, %s1591
                $region93: #{tpu_custom_call.1} parent=89 // loop_header_branch
                  %1567 = sbr.rel (%p1564) target = $region97
                $region94: #{tpu_custom_call.1} parent=89 // loop_body
                  %v1571 = vld [vmem:[%s1569] sm:$0xff]
                  %1572 = vst [vmem:[%s1570] sm:$0xff] %v1571
                  %v1573 = vld [vmem:[%s1569 + $0x8] sm:$0xff]
                  %1574 = vst [vmem:[%s1570 + $0x8] sm:$0xff] %v1573
                  %v1575 = vld [vmem:[%s1569 + $0x10] sm:$0xff]
                  %1576 = vst [vmem:[%s1570 + $0x10] sm:$0xff] %v1575
                  %v1577 = vld [vmem:[%s1569 + $0x18] sm:$0xff]
                  %1578 = vst [vmem:[%s1570 + $0x18] sm:$0xff] %v1577
                  %v1579 = vld [vmem:[%s1569 + $0x20] sm:$0xff]
                  %1580 = vst [vmem:[%s1570 + $0x20] sm:$0xff] %v1579
                  %v1581 = vld [vmem:[%s1569 + $0x28] sm:$0xff]
                  %1582 = vst [vmem:[%s1570 + $0x28] sm:$0xff] %v1581
                  %v1583 = vld [vmem:[%s1569 + $0x30] sm:$0xff]
                  %1584 = vst [vmem:[%s1570 + $0x30] sm:$0xff] %v1583
                  %s1585 = sadd.s32 1, %s1568
                  %p1586 = scmp.ge.s32.totalorder %s1585, %s1560
                  %s1587 = scalar_select %p1586, 0, %s1585
                  %s1588 = smul.u32 %s1587, 56
                  %s1589 = smul.u32 %s1587, 56
                  %s1590 = scalar_lea.vmem %s1481, %s1588 [#allocation2]
                  %s1591 = scalar_lea.vmem %s1492, %s1589
                $region95: #{tpu_custom_call.1} parent=89 // loop_footer
                  %s1565 = sadd.s32 %s1563, 1
                $region96: #{tpu_custom_call.1} parent=89 // loop_footer_branch
                  %1562 = sbr.rel target = $region92
                $region97: #{tpu_custom_call.1} parent=89 // loop_exit
                  _
                %s1592 = sdiv.u32.pop %s1488, 7
                %s1593 = srem.u32.pop %s1488, 7
                %s1594 = smul.u32 %s1592, 7
                %s1595 = smul.u32 8, %s1594
                %s1596 = scalar_lea.vmem %s1481, %s1595 [#allocation2]
                %s1597 = smul.u32 8, %s1594
                %s1598 = scalar_lea.vmem %s1492, %s1597
                // While loop
                $region98: #{tpu_custom_call.1} parent=89 // loop_pre_header
                  _
                $region99: #{tpu_custom_call.1} parent=89 // loop_header
                  %s1600 = sphi 0, %s1602
                  %p1601 = scmp.ge.s32.totalorder %s1600, %s1593
                  %s1605 = sphi 0, %s1612
                  %s1606 = sphi %s1596, %s1615
                  %s1607 = sphi %s1598, %s1616
                $region100: #{tpu_custom_call.1} parent=89 // loop_header_branch
                  %1604 = sbr.rel (%p1601) target = $region104
                $region101: #{tpu_custom_call.1} parent=89 // loop_body
                  %v1608 = vld [vmem:[%s1606] sm:$0xff]
                  %1609 = vst [vmem:[%s1607] sm:$0xff] %v1608
                  %s1610 = sadd.s32 1, %s1605
                  %p1611 = scmp.ge.s32.totalorder %s1610, %s1593
                  %s1612 = scalar_select %p1611, 0, %s1610
                  %s1613 = smul.u32 %s1612, 8
                  %s1614 = smul.u32 %s1612, 8
                  %s1615 = scalar_lea.vmem %s1596, %s1613 [#allocation2]
                  %s1616 = scalar_lea.vmem %s1598, %s1614
                $region102: #{tpu_custom_call.1} parent=89 // loop_footer
                  %s1602 = sadd.s32 %s1600, 1
                $region103: #{tpu_custom_call.1} parent=89 // loop_footer_branch
                  %1599 = sbr.rel target = $region99
                $region104: #{tpu_custom_call.1} parent=89 // loop_exit
                  _
              $region90: #{tpu_custom_call.1} parent=67 // pred_fallthru
                _
              // Predicated region
              $region105: #{tpu_custom_call.1} parent=67 // pred_check
                _
              $region106: #{tpu_custom_call.1} parent=67 // pred_check_branch
                %1618 = sbr.rel target = $region108
              $region107: #{tpu_custom_call.1} parent=67 // pred_region
                _
              $region108: #{tpu_custom_call.1} parent=67 // pred_fallthru
                _
            $region68: #{tpu_custom_call.1} parent=63 // pred_fallthru
              _
            // Predicated region
            $region69: #{tpu_custom_call.1} parent=63 // pred_check
              _
            $region70: #{tpu_custom_call.1} parent=63 // pred_check_branch
              %1499 = sbr.rel target = $region72
            $region71: #{tpu_custom_call.1} parent=63 // pred_region
              %s1501 = sdiv.u32.pop %s1488, 7
              %s1502 = srem.u32.pop %s1488, 7
              // While loop
              $region73: #{tpu_custom_call.1} parent=71 // loop_pre_header
                _
              $region74: #{tpu_custom_call.1} parent=71 // loop_header
                %s1504 = sphi 0, %s1506
                %p1505 = scmp.ge.s32.totalorder %s1504, %s1501
                %s1509 = sphi 0, %s1528
                %s1510 = sphi %s1481, %s1531
                %s1511 = sphi %s1492, %s1532
              $region75: #{tpu_custom_call.1} parent=71 // loop_header_branch
                %1508 = sbr.rel (%p1505) target = $region79
              $region76: #{tpu_custom_call.1} parent=71 // loop_body
                %v1512 = vld [vmem:[%s1510] sm:$0xff]
                %1513 = vst [vmem:[%s1511] sm:$0xff] %v1512
                %v1514 = vld [vmem:[%s1510 + $0x8] sm:$0xff]
                %1515 = vst [vmem:[%s1511 + $0x8] sm:$0xff] %v1514
                %v1516 = vld [vmem:[%s1510 + $0x10] sm:$0xff]
                %1517 = vst [vmem:[%s1511 + $0x10] sm:$0xff] %v1516
                %v1518 = vld [vmem:[%s1510 + $0x18] sm:$0xff]
                %1519 = vst [vmem:[%s1511 + $0x18] sm:$0xff] %v1518
                %v1520 = vld [vmem:[%s1510 + $0x20] sm:$0xff]
                %1521 = vst [vmem:[%s1511 + $0x20] sm:$0xff] %v1520
                %v1522 = vld [vmem:[%s1510 + $0x28] sm:$0xff]
                %1523 = vst [vmem:[%s1511 + $0x28] sm:$0xff] %v1522
                %v1524 = vld [vmem:[%s1510 + $0x30] sm:$0xff]
                %1525 = vst [vmem:[%s1511 + $0x30] sm:$0xff] %v1524
                %s1526 = sadd.s32 1, %s1509
                %p1527 = scmp.ge.s32.totalorder %s1526, %s1501
                %s1528 = scalar_select %p1527, 0, %s1526
                %s1529 = smul.u32 %s1528, 56
                %s1530 = smul.u32 %s1528, 56
                %s1531 = scalar_lea.vmem %s1481, %s1529 [#allocation2]
                %s1532 = scalar_lea.vmem %s1492, %s1530
              $region77: #{tpu_custom_call.1} parent=71 // loop_footer
                %s1506 = sadd.s32 %s1504, 1
              $region78: #{tpu_custom_call.1} parent=71 // loop_footer_branch
                %1503 = sbr.rel target = $region74
              $region79: #{tpu_custom_call.1} parent=71 // loop_exit
                _
              %s1533 = sdiv.u32.pop %s1488, 7
              %s1534 = srem.u32.pop %s1488, 7
              %s1535 = smul.u32 %s1533, 7
              %s1536 = smul.u32 8, %s1535
              %s1537 = scalar_lea.vmem %s1481, %s1536 [#allocation2]
              %s1538 = smul.u32 8, %s1535
              %s1539 = scalar_lea.vmem %s1492, %s1538
              // While loop
              $region80: #{tpu_custom_call.1} parent=71 // loop_pre_header
                _
              $region81: #{tpu_custom_call.1} parent=71 // loop_header
                %s1541 = sphi 0, %s1543
                %p1542 = scmp.ge.s32.totalorder %s1541, %s1534
                %s1546 = sphi 0, %s1553
                %s1547 = sphi %s1537, %s1556
                %s1548 = sphi %s1539, %s1557
              $region82: #{tpu_custom_call.1} parent=71 // loop_header_branch
                %1545 = sbr.rel (%p1542) target = $region86
              $region83: #{tpu_custom_call.1} parent=71 // loop_body
                %v1549 = vld [vmem:[%s1547] sm:$0xff]
                %1550 = vst [vmem:[%s1548] sm:$0xff] %v1549
                %s1551 = sadd.s32 1, %s1546
                %p1552 = scmp.ge.s32.totalorder %s1551, %s1534
                %s1553 = scalar_select %p1552, 0, %s1551
                %s1554 = smul.u32 %s1553, 8
                %s1555 = smul.u32 %s1553, 8
                %s1556 = scalar_lea.vmem %s1537, %s1554 [#allocation2]
                %s1557 = scalar_lea.vmem %s1539, %s1555
              $region84: #{tpu_custom_call.1} parent=71 // loop_footer
                %s1543 = sadd.s32 %s1541, 1
              $region85: #{tpu_custom_call.1} parent=71 // loop_footer_branch
                %1540 = sbr.rel target = $region81
              $region86: #{tpu_custom_call.1} parent=71 // loop_exit
                _
            $region72: #{tpu_custom_call.1} parent=63 // pred_fallthru
              _
          $region64: #{tpu_custom_call.1} parent=59 // pred_fallthru
            _
          %1619 = vnop
        $region60: #{tpu_custom_call.1} parent=55 // pred_fallthru
          _
      $region56: #{tpu_custom_call.1} parent=5 // pred_fallthru
        _
      %p1620 = scmp.le.s32.totalorder 2, %s15
      // Predicated region
      $region109: #{tpu_custom_call.1} parent=5 // pred_check
        %p1621 = pneg %p1620
      $region110: #{tpu_custom_call.1} parent=5 // pred_check_branch
        %1623 = sbr.rel (%p1621) target = $region112
      $region111: #{tpu_custom_call.1} parent=5 // pred_region
        %s1624 = ssub.s32 %s15, 2
        // Predicated region
        $region113: #{tpu_custom_call.1} parent=111 // pred_check
          %p1625 = pneg %p238
        $region114: #{tpu_custom_call.1} parent=111 // pred_check_branch
          %1627 = sbr.rel (%p1625) target = $region116
        $region115: #{tpu_custom_call.1} parent=111 // pred_region
          %s1628 = sand.u32 %s223, 1
          %s1629 = sand.u32 %s223, 1
          %s1630 = smul.addr %s1629, 56
          %s1631 = scalar_lea.vmem [#allocation2], %s1630
        $region116: #{tpu_custom_call.1} parent=111 // pred_fallthru
          _
      $region112: #{tpu_custom_call.1} parent=5 // pred_fallthru
        _
    $region6: #{tpu_custom_call.1} parent=1 // loop_footer
      %s19 = sadd.s32 1, %s15
    $region7: #{tpu_custom_call.1} parent=1 // loop_footer_branch
      %14 = sbr.rel target = $region3
    $region8: #{tpu_custom_call.1} parent=1 // loop_exit
      _

</llo_original>
